<compile_context>
chip_gen: v5e
topology: v5e:2x2
jax: 0.10.0
libtpu: 0.0.40
codegen_flags: <defaults>
</compile_context>

<pallas_src>
import math

import jax
import jax.numpy as jnp
from jax import lax
from jax.experimental import pallas as pl
from jax.experimental.pallas import tpu as pltpu


_DEF_GAIN = {'linear': 1.0, 'relu': math.sqrt(2.0), 'lrelu': math.sqrt(2.0)}


def _round_up(x, m):
    return ((x + m - 1) // m) * m


# ----------------------------- Pallas kernel --------------------------------

def _make_kernel(K, Wp, TM, activation, act_gain, clamp):
    """Fused KxK 'same' conv + bias + activation(+gain,+clamp) for one row tile."""

    def kernel(x_ref, w_ref, b_ref, o_ref, acc_ref):
        # x_ref  : (1, M_in, Cinp)  flattened spatially-padded slab (compute dtype)
        # w_ref  : (K*K, Cinp, TN)  per-tap GEMM weights (compute dtype)
        # b_ref  : (1, TN)          f32 bias
        # o_ref  : (1, TM, TN)      output rows in the (y*Wp + x) row space
        # acc_ref: (TM, TN)         f32 accumulator scratch
        m = pl.program_id(2)
        base = pl.multiple_of(m * TM, 8)            # TM is a multiple of 8

        # K*K shifted-slab GEMMs accumulated on the MXU in f32.  Each tap's lhs is
        # a plain 2-D row slice with a static extra offset — no strided 3-D
        # slice+reshape relayouts, no im2col tensor.
        for ky in range(K):
            for kx in range(K):
                off = ky * Wp + kx                  # static per-tap row shift
                lhs = x_ref[0, pl.ds(base + off, TM), :]
                contrib = jnp.dot(lhs, w_ref[ky * K + kx],
                                  preferred_element_type=jnp.float32)
                if ky == 0 and kx == 0:
                    acc_ref[...] = contrib
                else:
                    acc_ref[...] += contrib

        # bias_act epilogue (f32, VPU — free under the MXU): act(x+b)*gain, clamp.
        y = acc_ref[...] + b_ref[...]
        if activation == 'relu':
            y = jnp.maximum(y, 0.0)
        elif activation == 'lrelu':
            y = jnp.where(y >= 0.0, y, 0.2 * y)
        if act_gain != 1.0:
            y = y * act_gain
        if clamp is not None:
            y = jnp.clip(y, -clamp, clamp)
        o_ref[0] = y.astype(o_ref.dtype)

    return kernel


# ------------------------------ JAX wrapper ----------------------------------

def conv2d_layer_forward(x_nchw, weight, bias, *, kernel_size=3,
                         activation='linear', up=1, down=1, conv_clamp=None,
                         gain=1.0, compute_dtype=jnp.bfloat16,
                         tm_target=256, tn_max=256):
    """Pallas forward of Conv2dLayer (default up=down=1 path). NCHW in / NCHW out."""
    # TODO(synk): up!=1 / down!=1 resample path (upfirdn2d with resample_filter)
    # is not implemented; only the default up=down=1 convolution path is covered.
    assert up == 1 and down == 1, "only up=1, down=1 is implemented"
    assert kernel_size % 2 == 1, "odd kernel sizes only"

    N, Cin, H, W = x_nchw.shape
    Cout = weight.shape[0]
    K = kernel_size
    pad = K // 2
    Hp, Wp = H + 2 * pad, W + 2 * pad

    weight_gain = 1.0 / math.sqrt(Cin * K * K)
    act_gain = _DEF_GAIN[activation] * gain
    clamp = conv_clamp * gain if conv_clamp is not None else None

    itemsize = jnp.dtype(compute_dtype).itemsize
    sub = 8 * 4 // itemsize                      # sublane pack: 8 (f32) / 16 (bf16)
    Cinp = _round_up(Cin, sub)                   # contraction pad: pack unit only, NOT 128
    Coutp = _round_up(Cout, 128)                 # lane-dense output / MXU N dim

    # ---- tiling: rows live in the Wp-wide (y*Wp + x) space ------------------
    M_total = H * Wp
    num_m = -(-M_total // tm_target)
    TM = _round_up(-(-M_total // num_m), 8)
    M_out = num_m * TM
    TN = tn_max if (Coutp % tn_max == 0) else 128
    num_n = Coutp // TN

    # ---- input: NCHW -> NHWC -> halo pad -> flatten -> tail-pad rows so every
    # shifted tap slice stays in bounds (padded rows are zeros).
    x = jnp.transpose(x_nchw, (0, 2, 3, 1)).astype(compute_dtype)
    x = jnp.pad(x, ((0, 0), (pad, pad), (pad, pad), (0, Cinp - Cin)))
    x = x.reshape(N, Hp * Wp, Cinp)
    rows_needed = M_out + (K - 1) * (Wp + 1)
    M_in = _round_up(rows_needed, sub)
    x = jnp.pad(x, ((0, 0), (0, M_in - Hp * Wp), (0, 0)))

    # ---- weights: OIHW -> (ky,kx,ci,co), fold weight_gain, pad channels,
    # per-tap GEMM form (K*K, Cinp, Coutp), cast to compute dtype.
    w = weight.astype(jnp.float32) * weight_gain
    w = jnp.transpose(w, (2, 3, 1, 0))
    w = jnp.pad(w, ((0, 0), (0, 0), (0, Cinp - Cin), (0, Coutp - Cout)))
    w = w.reshape(K * K, Cinp, Coutp).astype(compute_dtype)

    if bias is None:
        b = jnp.zeros((1, Coutp), jnp.float32)
    else:
        b = jnp.pad(bias.astype(jnp.float32), (0, Coutp - Cout)).reshape(1, Coutp)

    kernel = _make_kernel(K, Wp, TM, activation, act_gain, clamp)

    # Per-step VMEM budget: double-buffered slab / weights / bias / out tile +
    # f32 accumulator scratch.  Cap well under v7x's 64 MiB physical VMEM.
    est = (2 * M_in * Cinp * itemsize
           + 2 * K * K * Cinp * TN * itemsize
           + 2 * TN * 4
           + 2 * TM * TN * 4
           + TM * TN * 4)
    vmem_limit = min(48 * 1024 * 1024,
                     max(32 * 1024 * 1024, int(est * 5 // 4) + (1 << 20)))

    out_flat = pl.pallas_call(
        kernel,
        out_shape=jax.ShapeDtypeStruct((N, M_out, Coutp), x_nchw.dtype),
        grid=(N, num_n, num_m),
        in_specs=[
            # whole per-image slab; index constant over (j, m) -> DMA'd once per image
            pl.BlockSpec((1, M_in, Cinp), lambda n, j, m: (n, 0, 0)),
            # weights / bias constant over (n, m) -> DMA'd once per Cout tile
            pl.BlockSpec((K * K, Cinp, TN), lambda n, j, m: (0, 0, j)),
            pl.BlockSpec((1, TN), lambda n, j, m: (0, j)),
        ],
        out_specs=pl.BlockSpec((1, TM, TN), lambda n, j, m: (n, m, j)),
        scratch_shapes=[pltpu.VMEM((TM, TN), jnp.float32)],
        compiler_params=pltpu.CompilerParams(
            dimension_semantics=("parallel", "parallel", "parallel"),
            vmem_limit_bytes=vmem_limit),
    )(x, w, b)

    # Drop padded rows / garbage columns / padded output channels, back to NCHW.
    out = out_flat[:, :H * Wp, :Cout].reshape(N, H, Wp, Cout)[:, :, :W, :]
    return jnp.transpose(out, (0, 3, 1, 2))


# ----------------------------- pure-JAX reference ----------------------------

def reference_forward(x, weight, bias, *, kernel_size=3, activation='linear',
                      conv_clamp=None, gain=1.0, compute_dtype=jnp.float32):
    """f32 reference; rounds x and the scaled weights to compute_dtype at the
    same points as the kernel (bf16 rounding is expected, not a bug)."""
    Cin = x.shape[1]
    K = kernel_size
    pad = K // 2
    wg = 1.0 / math.sqrt(Cin * K * K)
    w = (weight.astype(jnp.float32) * wg).astype(compute_dtype).astype(jnp.float32)
    xr = x.astype(compute_dtype).astype(jnp.float32)
    y = lax.conv_general_dilated(
        xr, w, (1, 1), ((pad, pad), (pad, pad)),
        dimension_numbers=('NCHW', 'OIHW', 'NCHW'),
        precision=lax.Precision.HIGHEST)
    if bias is not None:
        y = y + bias.astype(jnp.float32)[None, :, None, None]
    if activation == 'relu':
        y = jnp.maximum(y, 0.0)
    elif activation == 'lrelu':
        y = jnp.where(y >= 0.0, y, 0.2 * y)
    ag = _DEF_GAIN[activation] * gain
    if ag != 1.0:
        y = y * ag
    if conv_clamp is not None:
        c = conv_clamp * gain
        y = jnp.clip(y, -c, c)
    return y


# --------------------------------- main ---------------------------------------

if __name__ == "__main__":
    key = jax.random.PRNGKey(0)
    k_x, k_w, k_b = jax.random.split(key, 3)

    N, Cin, Cout, H, W, K = 2, 4, 8, 16, 16, 3
    x = jax.random.normal(k_x, (N, Cin, H, W), jnp.float32)
    weight = jax.random.normal(k_w, (Cout, Cin, K, K), jnp.float32)  # torch.randn init
    bias = jnp.zeros((Cout,), jnp.float32)                           # zero init (per module)

    # (1) f32 debug path: exact check of tap indexing + epilogue.
    out32 = jax.block_until_ready(conv2d_layer_forward(
        x, weight, bias, kernel_size=K, compute_dtype=jnp.float32))
    ref32 = jax.block_until_ready(reference_forward(
        x, weight, bias, kernel_size=K, compute_dtype=jnp.float32))
    assert out32.shape == (N, Cout, H, W), out32.shape
    err = float(jnp.max(jnp.abs(out32 - ref32)))
    assert jnp.allclose(out32, ref32, atol=1e-4, rtol=1e-4), err

    # (2) bf16 production path (MXU-native), f32 accumulation.
    outbf = jax.block_until_ready(conv2d_layer_forward(x, weight, bias, kernel_size=K))
    refbf = jax.block_until_ready(reference_forward(
        x, weight, bias, kernel_size=K, compute_dtype=jnp.bfloat16))
    err = float(jnp.max(jnp.abs(outbf - refbf)))
    assert jnp.allclose(outbf, refbf, atol=1e-3, rtol=1e-3), err

    # (3) fused bias / lrelu / act-gain / clamp epilogue (bf16 path).
    bias2 = 0.1 * jax.random.normal(k_b, (Cout,), jnp.float32)
    out2 = jax.block_until_ready(conv2d_layer_forward(
        x, weight, bias2, kernel_size=K, activation='lrelu', conv_clamp=256.0))
    ref2 = jax.block_until_ready(reference_forward(
        x, weight, bias2, kernel_size=K, activation='lrelu', conv_clamp=256.0,
        compute_dtype=jnp.bfloat16))
    err2 = float(jnp.max(jnp.abs(out2 - ref2)))
    assert jnp.allclose(out2, ref2, atol=1e-3, rtol=1e-3), err2

    print("KERNEL_OK")
</pallas_src>

<mosaic_0001>
module attributes {stable_mosaic.version = 11 : i64} {
  func.func @kernel(%arg0: i32, %arg1: i32, %arg2: i32, %arg3: memref<1x328x8xf32, #tpu.memory_space<vmem>>, %arg4: memref<9x8x128xf32, #tpu.memory_space<vmem>>, %arg5: memref<1x128xf32, #tpu.memory_space<vmem>>, %arg6: memref<1x144x128xf32, #tpu.memory_space<vmem>>, %arg7: memref<144x128xf32, #tpu.memory_space<vmem>>) attributes {dimension_semantics = [#tpu.dimension_semantics<parallel>, #tpu.dimension_semantics<parallel>, #tpu.dimension_semantics<parallel>], iteration_bounds = array<i64: 2, 1, 2>, scalar_prefetch = 0 : i64, scratch_operands = 1 : i64, tpu.core_type = #tpu.core_type<tc>, window_params = [{transform_indices = @transform_0, window_bounds = array<i64: 1, 328, 8>}, {transform_indices = @transform_1, window_bounds = array<i64: 9, 8, 128>}, {transform_indices = @transform_2, window_bounds = array<i64: 1, 128>}, {transform_indices = @transform_3, window_bounds = array<i64: 1, 144, 128>}]} {
    %c144_i32 = arith.constant 144 : i32
    %0 = arith.muli %arg2, %c144_i32 : i32
    %1 = tpu.assume_multiple %0, 8 : i32
    %c0_i32 = arith.constant 0 : i32
    %2 = arith.addi %1, %c0_i32 : i32
    %c0 = arith.constant 0 : index
    %3 = arith.index_cast %2 : i32 to index
    %c0_0 = arith.constant 0 : index
    %4 = vector.load %arg3[%c0, %3, %c0_0] : memref<1x328x8xf32, #tpu.memory_space<vmem>>, vector<1x144x8xf32>
    %5 = vector.shape_cast %4 : vector<1x144x8xf32> to vector<144x8xf32>
    %c0_1 = arith.constant 0 : index
    %c0_2 = arith.constant 0 : index
    %c0_3 = arith.constant 0 : index
    %6 = vector.load %arg4[%c0_1, %c0_2, %c0_3] : memref<9x8x128xf32, #tpu.memory_space<vmem>>, vector<1x8x128xf32>
    %7 = vector.shape_cast %6 : vector<1x8x128xf32> to vector<8x128xf32>
    %cst = arith.constant dense<0.000000e+00> : vector<144x128xf32>
    %8 = tpu.matmul %5, %7, %cst {dimension_numbers = #tpu.dot_dimension_numbers<[1], [0], [0], [1], [0, 0, 1, 1], [], []>} : vector<144x8xf32>, vector<8x128xf32>, vector<144x128xf32> -> vector<144x128xf32>
    %c0_4 = arith.constant 0 : index
    %c0_5 = arith.constant 0 : index
    %9 = vector.load %arg7[%c0_4, %c0_5] : memref<144x128xf32, #tpu.memory_space<vmem>>, vector<144x128xf32>
    tpu.vector_store %arg7[%c0_4, %c0_5], %8 {strides = array<i32>} : memref<144x128xf32, #tpu.memory_space<vmem>>, vector<144x128xf32>,
    %c1_i32 = arith.constant 1 : i32
    %10 = arith.addi %1, %c1_i32 : i32
    %c0_6 = arith.constant 0 : index
    %11 = arith.index_cast %10 : i32 to index
    %c0_7 = arith.constant 0 : index
    %12 = vector.load %arg3[%c0_6, %11, %c0_7] : memref<1x328x8xf32, #tpu.memory_space<vmem>>, vector<1x144x8xf32>
    %13 = vector.shape_cast %12 : vector<1x144x8xf32> to vector<144x8xf32>
    %c1 = arith.constant 1 : index
    %c0_8 = arith.constant 0 : index
    %c0_9 = arith.constant 0 : index
    %14 = vector.load %arg4[%c1, %c0_8, %c0_9] : memref<9x8x128xf32, #tpu.memory_space<vmem>>, vector<1x8x128xf32>
    %15 = vector.shape_cast %14 : vector<1x8x128xf32> to vector<8x128xf32>
    %cst_10 = arith.constant dense<0.000000e+00> : vector<144x128xf32>
    %16 = tpu.matmul %13, %15, %cst_10 {dimension_numbers = #tpu.dot_dimension_numbers<[1], [0], [0], [1], [0, 0, 1, 1], [], []>} : vector<144x8xf32>, vector<8x128xf32>, vector<144x128xf32> -> vector<144x128xf32>
    %c0_11 = arith.constant 0 : index
    %c0_12 = arith.constant 0 : index
    %17 = vector.load %arg7[%c0_11, %c0_12] : memref<144x128xf32, #tpu.memory_space<vmem>>, vector<144x128xf32>
    %18 = arith.addf %17, %16 : vector<144x128xf32>
    %c0_13 = arith.constant 0 : index
    %c0_14 = arith.constant 0 : index
    %19 = vector.load %arg7[%c0_13, %c0_14] : memref<144x128xf32, #tpu.memory_space<vmem>>, vector<144x128xf32>
    tpu.vector_store %arg7[%c0_13, %c0_14], %18 {strides = array<i32>} : memref<144x128xf32, #tpu.memory_space<vmem>>, vector<144x128xf32>,
    %c2_i32 = arith.constant 2 : i32
    %20 = arith.addi %1, %c2_i32 : i32
    %c0_15 = arith.constant 0 : index
    %21 = arith.index_cast %20 : i32 to index
    %c0_16 = arith.constant 0 : index
    %22 = vector.load %arg3[%c0_15, %21, %c0_16] : memref<1x328x8xf32, #tpu.memory_space<vmem>>, vector<1x144x8xf32>
    %23 = vector.shape_cast %22 : vector<1x144x8xf32> to vector<144x8xf32>
    %c2 = arith.constant 2 : index
    %c0_17 = arith.constant 0 : index
    %c0_18 = arith.constant 0 : index
    %24 = vector.load %arg4[%c2, %c0_17, %c0_18] : memref<9x8x128xf32, #tpu.memory_space<vmem>>, vector<1x8x128xf32>
    %25 = vector.shape_cast %24 : vector<1x8x128xf32> to vector<8x128xf32>
    %cst_19 = arith.constant dense<0.000000e+00> : vector<144x128xf32>
    %26 = tpu.matmul %23, %25, %cst_19 {dimension_numbers = #tpu.dot_dimension_numbers<[1], [0], [0], [1], [0, 0, 1, 1], [], []>} : vector<144x8xf32>, vector<8x128xf32>, vector<144x128xf32> -> vector<144x128xf32>
    %c0_20 = arith.constant 0 : index
    %c0_21 = arith.constant 0 : index
    %27 = vector.load %arg7[%c0_20, %c0_21] : memref<144x128xf32, #tpu.memory_space<vmem>>, vector<144x128xf32>
    %28 = arith.addf %27, %26 : vector<144x128xf32>
    %c0_22 = arith.constant 0 : index
    %c0_23 = arith.constant 0 : index
    %29 = vector.load %arg7[%c0_22, %c0_23] : memref<144x128xf32, #tpu.memory_space<vmem>>, vector<144x128xf32>
    tpu.vector_store %arg7[%c0_22, %c0_23], %28 {strides = array<i32>} : memref<144x128xf32, #tpu.memory_space<vmem>>, vector<144x128xf32>,
    %c18_i32 = arith.constant 18 : i32
    %30 = arith.addi %1, %c18_i32 : i32
    %c0_24 = arith.constant 0 : index
    %31 = arith.index_cast %30 : i32 to index
    %c0_25 = arith.constant 0 : index
    %32 = vector.load %arg3[%c0_24, %31, %c0_25] : memref<1x328x8xf32, #tpu.memory_space<vmem>>, vector<1x144x8xf32>
    %33 = vector.shape_cast %32 : vector<1x144x8xf32> to vector<144x8xf32>
    %c3 = arith.constant 3 : index
    %c0_26 = arith.constant 0 : index
    %c0_27 = arith.constant 0 : index
    %34 = vector.load %arg4[%c3, %c0_26, %c0_27] : memref<9x8x128xf32, #tpu.memory_space<vmem>>, vector<1x8x128xf32>
    %35 = vector.shape_cast %34 : vector<1x8x128xf32> to vector<8x128xf32>
    %cst_28 = arith.constant dense<0.000000e+00> : vector<144x128xf32>
    %36 = tpu.matmul %33, %35, %cst_28 {dimension_numbers = #tpu.dot_dimension_numbers<[1], [0], [0], [1], [0, 0, 1, 1], [], []>} : vector<144x8xf32>, vector<8x128xf32>, vector<144x128xf32> -> vector<144x128xf32>
    %c0_29 = arith.constant 0 : index
    %c0_30 = arith.constant 0 : index
    %37 = vector.load %arg7[%c0_29, %c0_30] : memref<144x128xf32, #tpu.memory_space<vmem>>, vector<144x128xf32>
    %38 = arith.addf %37, %36 : vector<144x128xf32>
    %c0_31 = arith.constant 0 : index
    %c0_32 = arith.constant 0 : index
    %39 = vector.load %arg7[%c0_31, %c0_32] : memref<144x128xf32, #tpu.memory_space<vmem>>, vector<144x128xf32>
    tpu.vector_store %arg7[%c0_31, %c0_32], %38 {strides = array<i32>} : memref<144x128xf32, #tpu.memory_space<vmem>>, vector<144x128xf32>,
    %c19_i32 = arith.constant 19 : i32
    %40 = arith.addi %1, %c19_i32 : i32
    %c0_33 = arith.constant 0 : index
    %41 = arith.index_cast %40 : i32 to index
    %c0_34 = arith.constant 0 : index
    %42 = vector.load %arg3[%c0_33, %41, %c0_34] : memref<1x328x8xf32, #tpu.memory_space<vmem>>, vector<1x144x8xf32>
    %43 = vector.shape_cast %42 : vector<1x144x8xf32> to vector<144x8xf32>
    %c4 = arith.constant 4 : index
    %c0_35 = arith.constant 0 : index
    %c0_36 = arith.constant 0 : index
    %44 = vector.load %arg4[%c4, %c0_35, %c0_36] : memref<9x8x128xf32, #tpu.memory_space<vmem>>, vector<1x8x128xf32>
    %45 = vector.shape_cast %44 : vector<1x8x128xf32> to vector<8x128xf32>
    %cst_37 = arith.constant dense<0.000000e+00> : vector<144x128xf32>
    %46 = tpu.matmul %43, %45, %cst_37 {dimension_numbers = #tpu.dot_dimension_numbers<[1], [0], [0], [1], [0, 0, 1, 1], [], []>} : vector<144x8xf32>, vector<8x128xf32>, vector<144x128xf32> -> vector<144x128xf32>
    %c0_38 = arith.constant 0 : index
    %c0_39 = arith.constant 0 : index
    %47 = vector.load %arg7[%c0_38, %c0_39] : memref<144x128xf32, #tpu.memory_space<vmem>>, vector<144x128xf32>
    %48 = arith.addf %47, %46 : vector<144x128xf32>
    %c0_40 = arith.constant 0 : index
    %c0_41 = arith.constant 0 : index
    %49 = vector.load %arg7[%c0_40, %c0_41] : memref<144x128xf32, #tpu.memory_space<vmem>>, vector<144x128xf32>
    tpu.vector_store %arg7[%c0_40, %c0_41], %48 {strides = array<i32>} : memref<144x128xf32, #tpu.memory_space<vmem>>, vector<144x128xf32>,
    %c20_i32 = arith.constant 20 : i32
    %50 = arith.addi %1, %c20_i32 : i32
    %c0_42 = arith.constant 0 : index
    %51 = arith.index_cast %50 : i32 to index
    %c0_43 = arith.constant 0 : index
    %52 = vector.load %arg3[%c0_42, %51, %c0_43] : memref<1x328x8xf32, #tpu.memory_space<vmem>>, vector<1x144x8xf32>
    %53 = vector.shape_cast %52 : vector<1x144x8xf32> to vector<144x8xf32>
    %c5 = arith.constant 5 : index
    %c0_44 = arith.constant 0 : index
    %c0_45 = arith.constant 0 : index
    %54 = vector.load %arg4[%c5, %c0_44, %c0_45] : memref<9x8x128xf32, #tpu.memory_space<vmem>>, vector<1x8x128xf32>
    %55 = vector.shape_cast %54 : vector<1x8x128xf32> to vector<8x128xf32>
    %cst_46 = arith.constant dense<0.000000e+00> : vector<144x128xf32>
    %56 = tpu.matmul %53, %55, %cst_46 {dimension_numbers = #tpu.dot_dimension_numbers<[1], [0], [0], [1], [0, 0, 1, 1], [], []>} : vector<144x8xf32>, vector<8x128xf32>, vector<144x128xf32> -> vector<144x128xf32>
    %c0_47 = arith.constant 0 : index
    %c0_48 = arith.constant 0 : index
    %57 = vector.load %arg7[%c0_47, %c0_48] : memref<144x128xf32, #tpu.memory_space<vmem>>, vector<144x128xf32>
    %58 = arith.addf %57, %56 : vector<144x128xf32>
    %c0_49 = arith.constant 0 : index
    %c0_50 = arith.constant 0 : index
    %59 = vector.load %arg7[%c0_49, %c0_50] : memref<144x128xf32, #tpu.memory_space<vmem>>, vector<144x128xf32>
    tpu.vector_store %arg7[%c0_49, %c0_50], %58 {strides = array<i32>} : memref<144x128xf32, #tpu.memory_space<vmem>>, vector<144x128xf32>,
    %c36_i32 = arith.constant 36 : i32
    %60 = arith.addi %1, %c36_i32 : i32
    %c0_51 = arith.constant 0 : index
    %61 = arith.index_cast %60 : i32 to index
    %c0_52 = arith.constant 0 : index
    %62 = vector.load %arg3[%c0_51, %61, %c0_52] : memref<1x328x8xf32, #tpu.memory_space<vmem>>, vector<1x144x8xf32>
    %63 = vector.shape_cast %62 : vector<1x144x8xf32> to vector<144x8xf32>
    %c6 = arith.constant 6 : index
    %c0_53 = arith.constant 0 : index
    %c0_54 = arith.constant 0 : index
    %64 = vector.load %arg4[%c6, %c0_53, %c0_54] : memref<9x8x128xf32, #tpu.memory_space<vmem>>, vector<1x8x128xf32>
    %65 = vector.shape_cast %64 : vector<1x8x128xf32> to vector<8x128xf32>
    %cst_55 = arith.constant dense<0.000000e+00> : vector<144x128xf32>
    %66 = tpu.matmul %63, %65, %cst_55 {dimension_numbers = #tpu.dot_dimension_numbers<[1], [0], [0], [1], [0, 0, 1, 1], [], []>} : vector<144x8xf32>, vector<8x128xf32>, vector<144x128xf32> -> vector<144x128xf32>
    %c0_56 = arith.constant 0 : index
    %c0_57 = arith.constant 0 : index
    %67 = vector.load %arg7[%c0_56, %c0_57] : memref<144x128xf32, #tpu.memory_space<vmem>>, vector<144x128xf32>
    %68 = arith.addf %67, %66 : vector<144x128xf32>
    %c0_58 = arith.constant 0 : index
    %c0_59 = arith.constant 0 : index
    %69 = vector.load %arg7[%c0_58, %c0_59] : memref<144x128xf32, #tpu.memory_space<vmem>>, vector<144x128xf32>
    tpu.vector_store %arg7[%c0_58, %c0_59], %68 {strides = array<i32>} : memref<144x128xf32, #tpu.memory_space<vmem>>, vector<144x128xf32>,
    %c37_i32 = arith.constant 37 : i32
    %70 = arith.addi %1, %c37_i32 : i32
    %c0_60 = arith.constant 0 : index
    %71 = arith.index_cast %70 : i32 to index
    %c0_61 = arith.constant 0 : index
    %72 = vector.load %arg3[%c0_60, %71, %c0_61] : memref<1x328x8xf32, #tpu.memory_space<vmem>>, vector<1x144x8xf32>
    %73 = vector.shape_cast %72 : vector<1x144x8xf32> to vector<144x8xf32>
    %c7 = arith.constant 7 : index
    %c0_62 = arith.constant 0 : index
    %c0_63 = arith.constant 0 : index
    %74 = vector.load %arg4[%c7, %c0_62, %c0_63] : memref<9x8x128xf32, #tpu.memory_space<vmem>>, vector<1x8x128xf32>
    %75 = vector.shape_cast %74 : vector<1x8x128xf32> to vector<8x128xf32>
    %cst_64 = arith.constant dense<0.000000e+00> : vector<144x128xf32>
    %76 = tpu.matmul %73, %75, %cst_64 {dimension_numbers = #tpu.dot_dimension_numbers<[1], [0], [0], [1], [0, 0, 1, 1], [], []>} : vector<144x8xf32>, vector<8x128xf32>, vector<144x128xf32> -> vector<144x128xf32>
    %c0_65 = arith.constant 0 : index
    %c0_66 = arith.constant 0 : index
    %77 = vector.load %arg7[%c0_65, %c0_66] : memref<144x128xf32, #tpu.memory_space<vmem>>, vector<144x128xf32>
    %78 = arith.addf %77, %76 : vector<144x128xf32>
    %c0_67 = arith.constant 0 : index
    %c0_68 = arith.constant 0 : index
    %79 = vector.load %arg7[%c0_67, %c0_68] : memref<144x128xf32, #tpu.memory_space<vmem>>, vector<144x128xf32>
    tpu.vector_store %arg7[%c0_67, %c0_68], %78 {strides = array<i32>} : memref<144x128xf32, #tpu.memory_space<vmem>>, vector<144x128xf32>,
    %c38_i32 = arith.constant 38 : i32
    %80 = arith.addi %1, %c38_i32 : i32
    %c0_69 = arith.constant 0 : index
    %81 = arith.index_cast %80 : i32 to index
    %c0_70 = arith.constant 0 : index
    %82 = vector.load %arg3[%c0_69, %81, %c0_70] : memref<1x328x8xf32, #tpu.memory_space<vmem>>, vector<1x144x8xf32>
    %83 = vector.shape_cast %82 : vector<1x144x8xf32> to vector<144x8xf32>
    %c8 = arith.constant 8 : index
    %c0_71 = arith.constant 0 : index
    %c0_72 = arith.constant 0 : index
    %84 = vector.load %arg4[%c8, %c0_71, %c0_72] : memref<9x8x128xf32, #tpu.memory_space<vmem>>, vector<1x8x128xf32>
    %85 = vector.shape_cast %84 : vector<1x8x128xf32> to vector<8x128xf32>
    %cst_73 = arith.constant dense<0.000000e+00> : vector<144x128xf32>
    %86 = tpu.matmul %83, %85, %cst_73 {dimension_numbers = #tpu.dot_dimension_numbers<[1], [0], [0], [1], [0, 0, 1, 1], [], []>} : vector<144x8xf32>, vector<8x128xf32>, vector<144x128xf32> -> vector<144x128xf32>
    %c0_74 = arith.constant 0 : index
    %c0_75 = arith.constant 0 : index
    %87 = vector.load %arg7[%c0_74, %c0_75] : memref<144x128xf32, #tpu.memory_space<vmem>>, vector<144x128xf32>
    %88 = arith.addf %87, %86 : vector<144x128xf32>
    %c0_76 = arith.constant 0 : index
    %c0_77 = arith.constant 0 : index
    %89 = vector.load %arg7[%c0_76, %c0_77] : memref<144x128xf32, #tpu.memory_space<vmem>>, vector<144x128xf32>
    tpu.vector_store %arg7[%c0_76, %c0_77], %88 {strides = array<i32>} : memref<144x128xf32, #tpu.memory_space<vmem>>, vector<144x128xf32>,
    %c0_78 = arith.constant 0 : index
    %c0_79 = arith.constant 0 : index
    %90 = vector.load %arg7[%c0_78, %c0_79] : memref<144x128xf32, #tpu.memory_space<vmem>>, vector<144x128xf32>
    %c0_80 = arith.constant 0 : index
    %c0_81 = arith.constant 0 : index
    %91 = vector.load %arg5[%c0_80, %c0_81] : memref<1x128xf32, #tpu.memory_space<vmem>>, vector<1x128xf32>
    %92 = vector.broadcast %91 : vector<1x128xf32> to vector<144x128xf32>
    %93 = arith.addf %90, %92 : vector<144x128xf32>
    %c0_82 = arith.constant 0 : index
    %c0_83 = arith.constant 0 : index
    %c0_84 = arith.constant 0 : index
    %94 = vector.load %arg6[%c0_82, %c0_83, %c0_84] : memref<1x144x128xf32, #tpu.memory_space<vmem>>, vector<1x144x128xf32>
    %95 = vector.shape_cast %94 : vector<1x144x128xf32> to vector<144x128xf32>
    %96 = vector.shape_cast %93 : vector<144x128xf32> to vector<1x144x128xf32>
    tpu.vector_store %arg6[%c0_82, %c0_83, %c0_84], %96 {strides = array<i32>} : memref<1x144x128xf32, #tpu.memory_space<vmem>>, vector<1x144x128xf32>,
    return
  }
  func.func @transform_0(%arg0: i32, %arg1: i32, %arg2: i32) -> (i32, i32, i32) {
    %c0_i32 = arith.constant 0 : i32
    %c0_i32_0 = arith.constant 0 : i32
    %c0_i32_1 = arith.constant 0 : i32
    return %arg0, %c0_i32, %c0_i32_0 : i32, i32, i32
  }
  func.func @transform_1(%arg0: i32, %arg1: i32, %arg2: i32) -> (i32, i32, i32) {
    %c0_i32 = arith.constant 0 : i32
    %c0_i32_0 = arith.constant 0 : i32
    %c0_i32_1 = arith.constant 0 : i32
    return %c0_i32, %c0_i32_0, %arg1 : i32, i32, i32
  }
  func.func @transform_2(%arg0: i32, %arg1: i32, %arg2: i32) -> (i32, i32) {
    %c0_i32 = arith.constant 0 : i32
    %c0_i32_0 = arith.constant 0 : i32
    return %c0_i32, %arg1 : i32, i32
  }
  func.func @transform_3(%arg0: i32, %arg1: i32, %arg2: i32) -> (i32, i32, i32) {
    %c0_i32 = arith.constant 0 : i32
    return %arg0, %arg2, %arg1 : i32, i32, i32
  }
}

</mosaic_0001>

<llo_original>
// kernel: tpu_custom_call.1
$region0: #{tpu_custom_call.1}
  #allocation0 [shape = 'u32[]', space=smem, size = 0x4, offset = 0x4, fixed_abs, tag = 'smem constant byte address 0x4 - core index']
  #allocation1 [shape = 'u32[72,128]{1,0:T(1,128)}', space=vmem, size = 0x9000, scoped, tag = 'internal scratch']
  #allocation2 [shape = 'f32[144,128]{1,0:T(8,128)}', space=vmem, size = 0x12000, scoped, tag = 'scratch operand']
  %s0 = inlined_call_operand.vmem [shape: f32[2,328,8], index: 0, kind: input, shape index: {}]
  %s1 = inlined_call_operand.vmem [shape: f32[9,8,128], index: 1, kind: input, shape index: {}]
  %s2 = inlined_call_operand.vmem [shape: f32[1,128], index: 2, kind: input, shape index: {}]
  %s3 = inlined_call_operand.hbm [shape: f32[2,288,128], index: 3, kind: output, shape index: {}]
  %s4 = sld [smem:[#allocation0]]
  $region45: #{tpu_custom_call.1} parent=0
    _
  %s6 = ssub.s32 1, %s4
  %s7 = scalar_select 0, %s6, %s4
  $region1: #{tpu_custom_call.1} parent=0
    #allocation3 [shape = 'u8[147456]{0}', space=vmem, size = 0x24000, scoped, tag = 'output window, operand 0']
    #allocation4 [shape = 's32[2]{0}', space=sflag, size = 0x8, scoped, tag = 'scoped memory for tpu_custom_call.1']
    %8 = vsyncpa [#allocation4], 0
    %s9 = scalar_lea.sflag [#allocation4], 1
    %10 = vsyncpa %s9, 0
    loop: start=0, step=1, limit=6
    $region2: #{tpu_custom_call.1} parent=1 // loop_pre_header
      _
    $region3: #{tpu_custom_call.1} parent=1 // loop_header
      %s12 = sphi 0, %s16
      %p13 = scmp.ge.s32.totalorder %s12, 6
      %s19 = sphi 0, %s38
      %s20 = sphi 0, %s34
      %s21 = sphi 0, %s30
      %s22 = sphi 0, %s19
      %s23 = sphi 0, %s20
      %s24 = sphi 0, %s21
      %s25 = sphi 0, %s22
      %s26 = sphi 0, %s23
      %s27 = sphi 0, %s24
      %s41 = sphi 0, %s43
      %s44 = sphi 0, %s41
      %s45 = sphi 0, %s44
      %s61 = sphi 0, %s45
      %s67 = sphi 0, %s69
      %s70 = sphi 0, %s67
      %s71 = sphi 0, %s70
      %s87 = sphi 0, %s71
      %s93 = sphi 0, %s95
      %s96 = sphi 0, %s93
      %s97 = sphi 0, %s96
      %s113 = sphi 0, %s97
      %s123 = sphi 0, %s125
      %s126 = sphi 0, %s123
      %s127 = sphi 0, %s126
      %s143 = sphi 0, %s127
    $region4: #{tpu_custom_call.1} parent=1 // loop_header_branch
      %15 = sbr.rel (%p13) target = $region8
    $region5: #{tpu_custom_call.1} parent=1 // loop_body
      %s17 = ssub.s32 %s12, 1
      %s18 = ssub.s32 %s12, 2
      %s28 = sadd.s32 1, %s21
      %p29 = scmp.ge.s32.totalorder %s28, 2
      %s30 = scalar_select %p29, 0, %s28
      %s31 = sadd.s32 1, %s20
      %s32 = scalar_select %p29, %s31, %s20
      %p33 = scmp.ge.s32.totalorder %s32, 1
      %s34 = scalar_select %p33, 0, %s32
      %s35 = sadd.s32 1, %s19
      %s36 = scalar_select %p33, %s35, %s19
      %p37 = scmp.ge.s32.totalorder %s36, 2
      %s38 = scalar_select %p37, 0, %s36
      %s39 = ssub.s32 %s19, %s38
      %p40 = scmp.eq.s32.totalorder %s39, 0
      %s42 = sadd.s32 %s41, 1
      %s43 = scalar_select %p40, %s41, %s42
      %p46 = pneg %p40
      %p47 = scmp.eq.s32.totalorder %s12, 3
      %p48 = por %p46, %p47
      %p49 = scmp.ne.s32.totalorder %s41, %s44
      %p50 = scmp.eq.s32.totalorder %s12, 0
      %p51 = por %p49, %p50
      %p52 = scmp.ne.s32.totalorder %s41, %s44
      %p53 = scmp.eq.s32.totalorder %s17, 3
      %p54 = por %p52, %p53
      %p55 = scmp.ne.s32.totalorder %s44, %s45
      %p56 = scmp.eq.s32.totalorder %s17, 0
      %p57 = por %p55, %p56
      %p58 = scmp.ne.s32.totalorder %s44, %s45
      %p59 = scmp.eq.s32.totalorder %s18, 3
      %p60 = por %p58, %p59
      %p62 = scmp.ne.s32.totalorder %s45, %s61
      %p63 = scmp.eq.s32.totalorder %s18, 0
      %p64 = por %p62, %p63
      %s65 = ssub.s32 %s20, %s34
      %p66 = scmp.eq.s32.totalorder %s65, 0
      %s68 = sadd.s32 %s67, 1
      %s69 = scalar_select %p66, %s67, %s68
      %p72 = pneg %p66
      %p73 = scmp.eq.s32.totalorder %s12, 3
      %p74 = por %p72, %p73
      %p75 = scmp.ne.s32.totalorder %s67, %s70
      %p76 = scmp.eq.s32.totalorder %s12, 0
      %p77 = por %p75, %p76
      %p78 = scmp.ne.s32.totalorder %s67, %s70
      %p79 = scmp.eq.s32.totalorder %s17, 3
      %p80 = por %p78, %p79
      %p81 = scmp.ne.s32.totalorder %s70, %s71
      %p82 = scmp.eq.s32.totalorder %s17, 0
      %p83 = por %p81, %p82
      %p84 = scmp.ne.s32.totalorder %s70, %s71
      %p85 = scmp.eq.s32.totalorder %s18, 3
      %p86 = por %p84, %p85
      %p88 = scmp.ne.s32.totalorder %s71, %s87
      %p89 = scmp.eq.s32.totalorder %s18, 0
      %p90 = por %p88, %p89
      %s91 = ssub.s32 %s20, %s34
      %p92 = scmp.eq.s32.totalorder %s91, 0
      %s94 = sadd.s32 %s93, 1
      %s95 = scalar_select %p92, %s93, %s94
      %p98 = pneg %p92
      %p99 = scmp.eq.s32.totalorder %s12, 3
      %p100 = por %p98, %p99
      %p101 = scmp.ne.s32.totalorder %s93, %s96
      %p102 = scmp.eq.s32.totalorder %s12, 0
      %p103 = por %p101, %p102
      %p104 = scmp.ne.s32.totalorder %s93, %s96
      %p105 = scmp.eq.s32.totalorder %s17, 3
      %p106 = por %p104, %p105
      %p107 = scmp.ne.s32.totalorder %s96, %s97
      %p108 = scmp.eq.s32.totalorder %s17, 0
      %p109 = por %p107, %p108
      %p110 = scmp.ne.s32.totalorder %s96, %s97
      %p111 = scmp.eq.s32.totalorder %s18, 3
      %p112 = por %p110, %p111
      %p114 = scmp.ne.s32.totalorder %s97, %s113
      %p115 = scmp.eq.s32.totalorder %s18, 0
      %p116 = por %p114, %p115
      %s117 = ssub.s32 %s19, %s38
      %s118 = ssub.s32 %s21, %s30
      %s119 = sor.u32 %s117, %s118
      %s120 = ssub.s32 %s20, %s34
      %s121 = sor.u32 %s119, %s120
      %p122 = scmp.eq.s32.totalorder %s121, 0
      %s124 = sadd.s32 %s123, 1
      %s125 = scalar_select %p122, %s123, %s124
      %p128 = pneg %p122
      %p129 = scmp.eq.s32.totalorder %s12, 3
      %p130 = por %p128, %p129
      %p131 = scmp.ne.s32.totalorder %s123, %s126
      %p132 = scmp.eq.s32.totalorder %s12, 0
      %p133 = por %p131, %p132
      %p134 = scmp.ne.s32.totalorder %s123, %s126
      %p135 = scmp.eq.s32.totalorder %s17, 3
      %p136 = por %p134, %p135
      %p137 = scmp.ne.s32.totalorder %s126, %s127
      %p138 = scmp.eq.s32.totalorder %s17, 0
      %p139 = por %p137, %p138
      %p140 = scmp.ne.s32.totalorder %s126, %s127
      %p141 = scmp.eq.s32.totalorder %s18, 3
      %p142 = por %p140, %p141
      %p144 = scmp.ne.s32.totalorder %s127, %s143
      %p145 = scmp.eq.s32.totalorder %s18, 0
      %p146 = por %p144, %p145
      %p147 = scmp.le.s32.totalorder 1, %s12
      %p148 = scmp.lt.s32.totalorder %s12, 5
      %p149 = pnand %p147, %p148
      %p150 = pneg %p149
      // Predicated region
      $region9: #{tpu_custom_call.1} parent=5 // pred_check
        _
      $region10: #{tpu_custom_call.1} parent=5 // pred_check_branch
        %152 = sbr.rel (%p149) target = $region12
      $region11: #{tpu_custom_call.1} parent=5 // pred_region
        %s153 = ssub.s32 %s12, 1
        // Predicated region
        $region13: #{tpu_custom_call.1} parent=11 // pred_check
          %p154 = pneg %p83
        $region14: #{tpu_custom_call.1} parent=11 // pred_check_branch
          %156 = sbr.rel (%p154) target = $region16
        $region15: #{tpu_custom_call.1} parent=11 // pred_region
          %p157 = scmp.lt.s32.totalorder %s23, 0
          %s158 = scalar_select %p157, %s23, 0
          %s159 = smul.addr %s158, 8
          %s160 = scalar_lea.vmem %s1, %s159
        $region16: #{tpu_custom_call.1} parent=11 // pred_fallthru
          _
        // Predicated region
        $region17: #{tpu_custom_call.1} parent=11 // pred_check
          %p161 = pneg %p109
        $region18: #{tpu_custom_call.1} parent=11 // pred_check_branch
          %163 = sbr.rel (%p161) target = $region20
        $region19: #{tpu_custom_call.1} parent=11 // pred_region
          %p164 = scmp.lt.s32.totalorder %s23, 0
          %s165 = scalar_select %p164, %s23, 0
          %s166 = scalar_lea.vmem %s2, %s165
        $region20: #{tpu_custom_call.1} parent=11 // pred_fallthru
          _
      $region12: #{tpu_custom_call.1} parent=5 // pred_fallthru
        _
      %p167 = scmp.lt.s32.totalorder %s12, 4
      // Predicated region
      $region21: #{tpu_custom_call.1} parent=5 // pred_check
        %p168 = pneg %p167
      $region22: #{tpu_custom_call.1} parent=5 // pred_check_branch
        %170 = sbr.rel (%p168) target = $region24
      $region23: #{tpu_custom_call.1} parent=5 // pred_region
        // Predicated region
        $region25: #{tpu_custom_call.1} parent=23 // pred_check
          %p171 = pneg %p51
        $region26: #{tpu_custom_call.1} parent=23 // pred_check_branch
          %173 = sbr.rel (%p171) target = $region28
        $region27: #{tpu_custom_call.1} parent=23 // pred_region
          %p174 = scmp.lt.s32.totalorder %s19, 1
          %s175 = scalar_select %p174, %s19, 1
          %s176 = smul.addr %s175, 41
          %s177 = smul.addr %s176, 8
          %s178 = scalar_lea.vmem %s0, %s177
        $region28: #{tpu_custom_call.1} parent=23 // pred_fallthru
          _
      $region24: #{tpu_custom_call.1} parent=5 // pred_fallthru
        _
      %p179 = scmp.le.s32.totalorder 1, %s12
      %p180 = scmp.lt.s32.totalorder %s12, 5
      %p181 = pnand %p179, %p180
      %p182 = pneg %p181
      // Predicated region
      $region29: #{tpu_custom_call.1} parent=5 // pred_check
        _
      $region30: #{tpu_custom_call.1} parent=5 // pred_check_branch
        %184 = sbr.rel (%p181) target = $region32
      $region31: #{tpu_custom_call.1} parent=5 // pred_region
        %s185 = ssub.s32 %s12, 1
        %p186 = scmp.lt.s32.totalorder %s22, 1
        %s187 = scalar_select %p186, %s22, 1
        %s188 = smul.addr %s187, 41
        %s189 = smul.addr %s188, 8
        %s190 = scalar_lea.vmem %s0, %s189
        %p191 = pneg %p57
        %p192 = pneg %p54
        %p193 = scmp.lt.s32.totalorder %s23, 0
        %s194 = scalar_select %p193, %s23, 0
        %s195 = smul.addr %s194, 8
        %s196 = scalar_lea.vmem %s1, %s195
        %p197 = pneg %p83
        %p198 = pneg %p80
        %p199 = scmp.lt.s32.totalorder %s23, 0
        %s200 = scalar_select %p199, %s23, 0
        %s201 = scalar_lea.vmem %s2, %s200
        %p202 = pneg %p109
        %p203 = pneg %p106
        %p204 = pneg %p139
        %p205 = pneg %p136
        %s206 = sand.u32 %s126, 1
        %s207 = scalar_lea.sflag [#allocation4], %s206
        %s208 = sand.u32 %s126, 1
        %s209 = smul.addr %s208, 144
        %s210 = scalar_lea.vmem [#allocation3], %s209
        %p211 = scmp.lt.s32.totalorder %s22, 1
        %s212 = scalar_select %p211, %s22, 1
        %s213 = smul.addr %s212, 41
        %s214 = smul.addr %s213, 8
        %s215 = scalar_lea.vmem %s0, %s214
        %p216 = scmp.lt.s32.totalorder %s23, 0
        %s217 = scalar_select %p216, %s23, 0
        %s218 = smul.addr %s217, 8
        %s219 = scalar_lea.vmem %s1, %s218
        %p220 = scmp.lt.s32.totalorder %s23, 0
        %s221 = scalar_select %p220, %s23, 0
        %s222 = scalar_lea.vmem %s2, %s221
        %s223 = smul.u32 18, %s24
        %s224 = smul.u32 %s24, 144
        %s225 = scalar_lea.vmem %s215, %s224
        %v226 = vld [vmem:[%s225] sm:$0xff]
        %v227 = vld [vmem:[%s225 + $0x8] sm:$0xff]
        %v228 = vld [vmem:[%s225 + $0x10] sm:$0xff]
        %v229 = vld [vmem:[%s225 + $0x18] sm:$0xff]
        %v230 = vld [vmem:[%s225 + $0x20] sm:$0xff]
        %v231 = vld [vmem:[%s225 + $0x28] sm:$0xff]
        %v232 = vld [vmem:[%s225 + $0x30] sm:$0xff]
        %v233 = vld [vmem:[%s225 + $0x38] sm:$0xff]
        %v234 = vld [vmem:[%s225 + $0x40] sm:$0xff]
        %v235 = vld [vmem:[%s225 + $0x48] sm:$0xff]
        %v236 = vld [vmem:[%s225 + $0x50] sm:$0xff]
        %v237 = vld [vmem:[%s225 + $0x58] sm:$0xff]
        %v238 = vld [vmem:[%s225 + $0x60] sm:$0xff]
        %v239 = vld [vmem:[%s225 + $0x68] sm:$0xff]
        %v240 = vld [vmem:[%s225 + $0x70] sm:$0xff]
        %v241 = vld [vmem:[%s225 + $0x78] sm:$0xff]
        %v242 = vld [vmem:[%s225 + $0x80] sm:$0xff]
        %v243 = vld [vmem:[%s225 + $0x88] sm:$0xff]
        %v244 = vld [vmem:[%s219] sm:$0xff]
        %vm245 = vcmask 64512
        %v247 = vsel %vm245, %v226, 0
        %v250 = vsel %vm245, %v227, 0
        %v253 = vsel %vm245, %v228, 0
        %v256 = vsel %vm245, %v229, 0
        %v259 = vsel %vm245, %v230, 0
        %v262 = vsel %vm245, %v231, 0
        %v265 = vsel %vm245, %v232, 0
        %v268 = vsel %vm245, %v233, 0
        %v271 = vsel %vm245, %v234, 0
        %v274 = vsel %vm245, %v235, 0
        %v277 = vsel %vm245, %v236, 0
        %v280 = vsel %vm245, %v237, 0
        %v283 = vsel %vm245, %v238, 0
        %v286 = vsel %vm245, %v239, 0
        %v289 = vsel %vm245, %v240, 0
        %v292 = vsel %vm245, %v241, 0
        %v295 = vsel %vm245, %v242, 0
        %v298 = vsel %vm245, %v243, 0
        %300 = vmatpush.msra.mxu0 0.0
        %301 = vmatpush.msra.mxu0 0.0
        %302 = vmatpush.msra.mxu0 0.0
        %303 = vmatpush.msra.mxu0 0.0
        %304 = vmatpush.msra.mxu0 0.0
        %305 = vmatpush.msra.mxu0 0.0
        %306 = vmatpush.msra.mxu0 0.0
        %307 = vmatpush.msra.mxu0 0.0
        %308 = vmatpush.msra.mxu0 0.0
        %309 = vmatpush.msra.mxu0 0.0
        %310 = vmatpush.msra.mxu0 0.0
        %311 = vmatpush.msra.mxu0 0.0
        %312 = vmatpush.msra.mxu0 0.0
        %313 = vmatpush.msra.mxu0 0.0
        %314 = vmatpush.msra.mxu0 0.0
        %315 = vmatpush.msra.mxu0 %v244
        %316 = vmatmul.f32.gmra.mxu0 %v247
        %v317 = vpop.f32.mrf.mxu0
        %v318 = vadd.f32 0.0, %v317
        %319 = vmatmul.f32.gmra.mxu0 %v250
        %v320 = vpop.f32.mrf.mxu0
        %v321 = vadd.f32 0.0, %v320
        %322 = vmatmul.f32.gmra.mxu0 %v253
        %v323 = vpop.f32.mrf.mxu0
        %v324 = vadd.f32 0.0, %v323
        %325 = vmatmul.f32.gmra.mxu0 %v256
        %v326 = vpop.f32.mrf.mxu0
        %v327 = vadd.f32 0.0, %v326
        %328 = vmatmul.f32.gmra.mxu0 %v259
        %v329 = vpop.f32.mrf.mxu0
        %v330 = vadd.f32 0.0, %v329
        %331 = vmatmul.f32.gmra.mxu0 %v262
        %v332 = vpop.f32.mrf.mxu0
        %v333 = vadd.f32 0.0, %v332
        %334 = vmatmul.f32.gmra.mxu0 %v265
        %v335 = vpop.f32.mrf.mxu0
        %v336 = vadd.f32 0.0, %v335
        %337 = vmatmul.f32.gmra.mxu0 %v268
        %v338 = vpop.f32.mrf.mxu0
        %v339 = vadd.f32 0.0, %v338
        %340 = vmatmul.f32.gmra.mxu0 %v271
        %v341 = vpop.f32.mrf.mxu0
        %v342 = vadd.f32 0.0, %v341
        %343 = vmatmul.f32.gmra.mxu0 %v274
        %v344 = vpop.f32.mrf.mxu0
        %v345 = vadd.f32 0.0, %v344
        %346 = vmatmul.f32.gmra.mxu0 %v277
        %v347 = vpop.f32.mrf.mxu0
        %v348 = vadd.f32 0.0, %v347
        %349 = vmatmul.f32.gmra.mxu0 %v280
        %v350 = vpop.f32.mrf.mxu0
        %v351 = vadd.f32 0.0, %v350
        %352 = vmatmul.f32.gmra.mxu0 %v283
        %v353 = vpop.f32.mrf.mxu0
        %v354 = vadd.f32 0.0, %v353
        %355 = vmatmul.f32.gmra.mxu0 %v286
        %v356 = vpop.f32.mrf.mxu0
        %v357 = vadd.f32 0.0, %v356
        %358 = vmatmul.f32.gmra.mxu0 %v289
        %v359 = vpop.f32.mrf.mxu0
        %v360 = vadd.f32 0.0, %v359
        %361 = vmatmul.f32.gmra.mxu0 %v292
        %v362 = vpop.f32.mrf.mxu0
        %v363 = vadd.f32 0.0, %v362
        %364 = vmatmul.f32.gmra.mxu0 %v295
        %v365 = vpop.f32.mrf.mxu0
        %v366 = vadd.f32 0.0, %v365
        %367 = vmatmul.f32.gmra.mxu0 %v298
        %v368 = vpop.f32.mrf.mxu0
        %v369 = vadd.f32 0.0, %v368
        %370 = vdwg.mxu0
        %371 = vst [vmem:[#allocation2] sm:$0xff] %v318
        %372 = vst [vmem:[#allocation2 + $0x8] sm:$0xff] %v321
        %373 = vst [vmem:[#allocation2 + $0x10] sm:$0xff] %v324
        %374 = vst [vmem:[#allocation2 + $0x18] sm:$0xff] %v327
        %375 = vst [vmem:[#allocation2 + $0x20] sm:$0xff] %v330
        %376 = vst [vmem:[#allocation2 + $0x28] sm:$0xff] %v333
        %377 = vst [vmem:[#allocation2 + $0x30] sm:$0xff] %v336
        %378 = vst [vmem:[#allocation2 + $0x38] sm:$0xff] %v339
        %379 = vst [vmem:[#allocation2 + $0x40] sm:$0xff] %v342
        %380 = vst [vmem:[#allocation2 + $0x48] sm:$0xff] %v345
        %381 = vst [vmem:[#allocation2 + $0x50] sm:$0xff] %v348
        %382 = vst [vmem:[#allocation2 + $0x58] sm:$0xff] %v351
        %383 = vst [vmem:[#allocation2 + $0x60] sm:$0xff] %v354
        %384 = vst [vmem:[#allocation2 + $0x68] sm:$0xff] %v357
        %385 = vst [vmem:[#allocation2 + $0x70] sm:$0xff] %v360
        %386 = vst [vmem:[#allocation2 + $0x78] sm:$0xff] %v363
        %387 = vst [vmem:[#allocation2 + $0x80] sm:$0xff] %v366
        %388 = vst [vmem:[#allocation2 + $0x88] sm:$0xff] %v369
        %s389 = sadd.s32 %s224, 1
        %s390 = scalar_lea.vmem %s215, %s389
        %v391 = vld [vmem:[%s390] sm:$0xff]
        %v392 = vld [vmem:[%s390 + $0x8] sm:$0xff]
        %v393 = vld [vmem:[%s390 + $0x10] sm:$0xff]
        %v394 = vld [vmem:[%s390 + $0x18] sm:$0xff]
        %v395 = vld [vmem:[%s390 + $0x20] sm:$0xff]
        %v396 = vld [vmem:[%s390 + $0x28] sm:$0xff]
        %v397 = vld [vmem:[%s390 + $0x30] sm:$0xff]
        %v398 = vld [vmem:[%s390 + $0x38] sm:$0xff]
        %v399 = vld [vmem:[%s390 + $0x40] sm:$0xff]
        %v400 = vld [vmem:[%s390 + $0x48] sm:$0xff]
        %v401 = vld [vmem:[%s390 + $0x50] sm:$0xff]
        %v402 = vld [vmem:[%s390 + $0x58] sm:$0xff]
        %v403 = vld [vmem:[%s390 + $0x60] sm:$0xff]
        %v404 = vld [vmem:[%s390 + $0x68] sm:$0xff]
        %v405 = vld [vmem:[%s390 + $0x70] sm:$0xff]
        %v406 = vld [vmem:[%s390 + $0x78] sm:$0xff]
        %v407 = vld [vmem:[%s390 + $0x80] sm:$0xff]
        %v408 = vld [vmem:[%s390 + $0x88] sm:$0xff]
        %s409 = scalar_lea.vmem %s219, 8
        %v410 = vld [vmem:[%s409] sm:$0xff]
        %v412 = vsel %vm245, %v391, 0
        %v415 = vsel %vm245, %v392, 0
        %v418 = vsel %vm245, %v393, 0
        %v421 = vsel %vm245, %v394, 0
        %v424 = vsel %vm245, %v395, 0
        %v427 = vsel %vm245, %v396, 0
        %v430 = vsel %vm245, %v397, 0
        %v433 = vsel %vm245, %v398, 0
        %v436 = vsel %vm245, %v399, 0
        %v439 = vsel %vm245, %v400, 0
        %v442 = vsel %vm245, %v401, 0
        %v445 = vsel %vm245, %v402, 0
        %v448 = vsel %vm245, %v403, 0
        %v451 = vsel %vm245, %v404, 0
        %v454 = vsel %vm245, %v405, 0
        %v457 = vsel %vm245, %v406, 0
        %v460 = vsel %vm245, %v407, 0
        %v463 = vsel %vm245, %v408, 0
        %465 = vmatpush.msra.mxu0 0.0
        %466 = vmatpush.msra.mxu0 0.0
        %467 = vmatpush.msra.mxu0 0.0
        %468 = vmatpush.msra.mxu0 0.0
        %469 = vmatpush.msra.mxu0 0.0
        %470 = vmatpush.msra.mxu0 0.0
        %471 = vmatpush.msra.mxu0 0.0
        %472 = vmatpush.msra.mxu0 0.0
        %473 = vmatpush.msra.mxu0 0.0
        %474 = vmatpush.msra.mxu0 0.0
        %475 = vmatpush.msra.mxu0 0.0
        %476 = vmatpush.msra.mxu0 0.0
        %477 = vmatpush.msra.mxu0 0.0
        %478 = vmatpush.msra.mxu0 0.0
        %479 = vmatpush.msra.mxu0 0.0
        %480 = vmatpush.msra.mxu0 %v410
        %481 = vmatmul.f32.gmra.mxu0 %v412
        %v482 = vpop.f32.mrf.mxu0
        %v483 = vadd.f32 0.0, %v482
        %484 = vmatmul.f32.gmra.mxu0 %v415
        %v485 = vpop.f32.mrf.mxu0
        %v486 = vadd.f32 0.0, %v485
        %487 = vmatmul.f32.gmra.mxu0 %v418
        %v488 = vpop.f32.mrf.mxu0
        %v489 = vadd.f32 0.0, %v488
        %490 = vmatmul.f32.gmra.mxu0 %v421
        %v491 = vpop.f32.mrf.mxu0
        %v492 = vadd.f32 0.0, %v491
        %493 = vmatmul.f32.gmra.mxu0 %v424
        %v494 = vpop.f32.mrf.mxu0
        %v495 = vadd.f32 0.0, %v494
        %496 = vmatmul.f32.gmra.mxu0 %v427
        %v497 = vpop.f32.mrf.mxu0
        %v498 = vadd.f32 0.0, %v497
        %499 = vmatmul.f32.gmra.mxu0 %v430
        %v500 = vpop.f32.mrf.mxu0
        %v501 = vadd.f32 0.0, %v500
        %502 = vmatmul.f32.gmra.mxu0 %v433
        %v503 = vpop.f32.mrf.mxu0
        %v504 = vadd.f32 0.0, %v503
        %505 = vmatmul.f32.gmra.mxu0 %v436
        %v506 = vpop.f32.mrf.mxu0
        %v507 = vadd.f32 0.0, %v506
        %508 = vmatmul.f32.gmra.mxu0 %v439
        %v509 = vpop.f32.mrf.mxu0
        %v510 = vadd.f32 0.0, %v509
        %511 = vmatmul.f32.gmra.mxu0 %v442
        %v512 = vpop.f32.mrf.mxu0
        %v513 = vadd.f32 0.0, %v512
        %514 = vmatmul.f32.gmra.mxu0 %v445
        %v515 = vpop.f32.mrf.mxu0
        %v516 = vadd.f32 0.0, %v515
        %517 = vmatmul.f32.gmra.mxu0 %v448
        %v518 = vpop.f32.mrf.mxu0
        %v519 = vadd.f32 0.0, %v518
        %520 = vmatmul.f32.gmra.mxu0 %v451
        %v521 = vpop.f32.mrf.mxu0
        %v522 = vadd.f32 0.0, %v521
        %523 = vmatmul.f32.gmra.mxu0 %v454
        %v524 = vpop.f32.mrf.mxu0
        %v525 = vadd.f32 0.0, %v524
        %526 = vmatmul.f32.gmra.mxu0 %v457
        %v527 = vpop.f32.mrf.mxu0
        %v528 = vadd.f32 0.0, %v527
        %529 = vmatmul.f32.gmra.mxu0 %v460
        %v530 = vpop.f32.mrf.mxu0
        %v531 = vadd.f32 0.0, %v530
        %532 = vmatmul.f32.gmra.mxu0 %v463
        %v533 = vpop.f32.mrf.mxu0
        %v534 = vadd.f32 0.0, %v533
        %535 = vdwg.mxu0
        %v536 = vld [vmem:[#allocation2] sm:$0xff]
        %v537 = vld [vmem:[#allocation2 + $0x8] sm:$0xff]
        %v538 = vld [vmem:[#allocation2 + $0x10] sm:$0xff]
        %v539 = vld [vmem:[#allocation2 + $0x18] sm:$0xff]
        %v540 = vld [vmem:[#allocation2 + $0x20] sm:$0xff]
        %v541 = vld [vmem:[#allocation2 + $0x28] sm:$0xff]
        %v542 = vld [vmem:[#allocation2 + $0x30] sm:$0xff]
        %v543 = vld [vmem:[#allocation2 + $0x38] sm:$0xff]
        %v544 = vld [vmem:[#allocation2 + $0x40] sm:$0xff]
        %v545 = vld [vmem:[#allocation2 + $0x48] sm:$0xff]
        %v546 = vld [vmem:[#allocation2 + $0x50] sm:$0xff]
        %v547 = vld [vmem:[#allocation2 + $0x58] sm:$0xff]
        %v548 = vld [vmem:[#allocation2 + $0x60] sm:$0xff]
        %v549 = vld [vmem:[#allocation2 + $0x68] sm:$0xff]
        %v550 = vld [vmem:[#allocation2 + $0x70] sm:$0xff]
        %v551 = vld [vmem:[#allocation2 + $0x78] sm:$0xff]
        %v552 = vld [vmem:[#allocation2 + $0x80] sm:$0xff]
        %v553 = vld [vmem:[#allocation2 + $0x88] sm:$0xff]
        %v554 = vadd.f32 %v536, %v483
        %v555 = vadd.f32 %v537, %v486
        %v556 = vadd.f32 %v538, %v489
        %v557 = vadd.f32 %v539, %v492
        %v558 = vadd.f32 %v540, %v495
        %v559 = vadd.f32 %v541, %v498
        %v560 = vadd.f32 %v542, %v501
        %v561 = vadd.f32 %v543, %v504
        %v562 = vadd.f32 %v544, %v507
        %v563 = vadd.f32 %v545, %v510
        %v564 = vadd.f32 %v546, %v513
        %v565 = vadd.f32 %v547, %v516
        %v566 = vadd.f32 %v548, %v519
        %v567 = vadd.f32 %v549, %v522
        %v568 = vadd.f32 %v550, %v525
        %v569 = vadd.f32 %v551, %v528
        %v570 = vadd.f32 %v552, %v531
        %v571 = vadd.f32 %v553, %v534
        %572 = vst [vmem:[#allocation2] sm:$0xff] %v554
        %573 = vst [vmem:[#allocation2 + $0x8] sm:$0xff] %v555
        %574 = vst [vmem:[#allocation2 + $0x10] sm:$0xff] %v556
        %575 = vst [vmem:[#allocation2 + $0x18] sm:$0xff] %v557
        %576 = vst [vmem:[#allocation2 + $0x20] sm:$0xff] %v558
        %577 = vst [vmem:[#allocation2 + $0x28] sm:$0xff] %v559
        %578 = vst [vmem:[#allocation2 + $0x30] sm:$0xff] %v560
        %579 = vst [vmem:[#allocation2 + $0x38] sm:$0xff] %v561
        %580 = vst [vmem:[#allocation2 + $0x40] sm:$0xff] %v562
        %581 = vst [vmem:[#allocation2 + $0x48] sm:$0xff] %v563
        %582 = vst [vmem:[#allocation2 + $0x50] sm:$0xff] %v564
        %583 = vst [vmem:[#allocation2 + $0x58] sm:$0xff] %v565
        %584 = vst [vmem:[#allocation2 + $0x60] sm:$0xff] %v566
        %585 = vst [vmem:[#allocation2 + $0x68] sm:$0xff] %v567
        %586 = vst [vmem:[#allocation2 + $0x70] sm:$0xff] %v568
        %587 = vst [vmem:[#allocation2 + $0x78] sm:$0xff] %v569
        %588 = vst [vmem:[#allocation2 + $0x80] sm:$0xff] %v570
        %589 = vst [vmem:[#allocation2 + $0x88] sm:$0xff] %v571
        %s590 = sadd.s32 %s224, 2
        %s591 = scalar_lea.vmem %s215, %s590
        %v592 = vld [vmem:[%s591] sm:$0xff]
        %v593 = vld [vmem:[%s591 + $0x8] sm:$0xff]
        %v594 = vld [vmem:[%s591 + $0x10] sm:$0xff]
        %v595 = vld [vmem:[%s591 + $0x18] sm:$0xff]
        %v596 = vld [vmem:[%s591 + $0x20] sm:$0xff]
        %v597 = vld [vmem:[%s591 + $0x28] sm:$0xff]
        %v598 = vld [vmem:[%s591 + $0x30] sm:$0xff]
        %v599 = vld [vmem:[%s591 + $0x38] sm:$0xff]
        %v600 = vld [vmem:[%s591 + $0x40] sm:$0xff]
        %v601 = vld [vmem:[%s591 + $0x48] sm:$0xff]
        %v602 = vld [vmem:[%s591 + $0x50] sm:$0xff]
        %v603 = vld [vmem:[%s591 + $0x58] sm:$0xff]
        %v604 = vld [vmem:[%s591 + $0x60] sm:$0xff]
        %v605 = vld [vmem:[%s591 + $0x68] sm:$0xff]
        %v606 = vld [vmem:[%s591 + $0x70] sm:$0xff]
        %v607 = vld [vmem:[%s591 + $0x78] sm:$0xff]
        %v608 = vld [vmem:[%s591 + $0x80] sm:$0xff]
        %v609 = vld [vmem:[%s591 + $0x88] sm:$0xff]
        %s610 = scalar_lea.vmem %s219, 16
        %v611 = vld [vmem:[%s610] sm:$0xff]
        %v613 = vsel %vm245, %v592, 0
        %v616 = vsel %vm245, %v593, 0
        %v619 = vsel %vm245, %v594, 0
        %v622 = vsel %vm245, %v595, 0
        %v625 = vsel %vm245, %v596, 0
        %v628 = vsel %vm245, %v597, 0
        %v631 = vsel %vm245, %v598, 0
        %v634 = vsel %vm245, %v599, 0
        %v637 = vsel %vm245, %v600, 0
        %v640 = vsel %vm245, %v601, 0
        %v643 = vsel %vm245, %v602, 0
        %v646 = vsel %vm245, %v603, 0
        %v649 = vsel %vm245, %v604, 0
        %v652 = vsel %vm245, %v605, 0
        %v655 = vsel %vm245, %v606, 0
        %v658 = vsel %vm245, %v607, 0
        %v661 = vsel %vm245, %v608, 0
        %v664 = vsel %vm245, %v609, 0
        %666 = vmatpush.msra.mxu0 0.0
        %667 = vmatpush.msra.mxu0 0.0
        %668 = vmatpush.msra.mxu0 0.0
        %669 = vmatpush.msra.mxu0 0.0
        %670 = vmatpush.msra.mxu0 0.0
        %671 = vmatpush.msra.mxu0 0.0
        %672 = vmatpush.msra.mxu0 0.0
        %673 = vmatpush.msra.mxu0 0.0
        %674 = vmatpush.msra.mxu0 0.0
        %675 = vmatpush.msra.mxu0 0.0
        %676 = vmatpush.msra.mxu0 0.0
        %677 = vmatpush.msra.mxu0 0.0
        %678 = vmatpush.msra.mxu0 0.0
        %679 = vmatpush.msra.mxu0 0.0
        %680 = vmatpush.msra.mxu0 0.0
        %681 = vmatpush.msra.mxu0 %v611
        %682 = vmatmul.f32.gmra.mxu0 %v613
        %v683 = vpop.f32.mrf.mxu0
        %v684 = vadd.f32 0.0, %v683
        %685 = vmatmul.f32.gmra.mxu0 %v616
        %v686 = vpop.f32.mrf.mxu0
        %v687 = vadd.f32 0.0, %v686
        %688 = vmatmul.f32.gmra.mxu0 %v619
        %v689 = vpop.f32.mrf.mxu0
        %v690 = vadd.f32 0.0, %v689
        %691 = vmatmul.f32.gmra.mxu0 %v622
        %v692 = vpop.f32.mrf.mxu0
        %v693 = vadd.f32 0.0, %v692
        %694 = vmatmul.f32.gmra.mxu0 %v625
        %v695 = vpop.f32.mrf.mxu0
        %v696 = vadd.f32 0.0, %v695
        %697 = vmatmul.f32.gmra.mxu0 %v628
        %v698 = vpop.f32.mrf.mxu0
        %v699 = vadd.f32 0.0, %v698
        %700 = vmatmul.f32.gmra.mxu0 %v631
        %v701 = vpop.f32.mrf.mxu0
        %v702 = vadd.f32 0.0, %v701
        %703 = vmatmul.f32.gmra.mxu0 %v634
        %v704 = vpop.f32.mrf.mxu0
        %v705 = vadd.f32 0.0, %v704
        %706 = vmatmul.f32.gmra.mxu0 %v637
        %v707 = vpop.f32.mrf.mxu0
        %v708 = vadd.f32 0.0, %v707
        %709 = vmatmul.f32.gmra.mxu0 %v640
        %v710 = vpop.f32.mrf.mxu0
        %v711 = vadd.f32 0.0, %v710
        %712 = vmatmul.f32.gmra.mxu0 %v643
        %v713 = vpop.f32.mrf.mxu0
        %v714 = vadd.f32 0.0, %v713
        %715 = vmatmul.f32.gmra.mxu0 %v646
        %v716 = vpop.f32.mrf.mxu0
        %v717 = vadd.f32 0.0, %v716
        %718 = vmatmul.f32.gmra.mxu0 %v649
        %v719 = vpop.f32.mrf.mxu0
        %v720 = vadd.f32 0.0, %v719
        %721 = vmatmul.f32.gmra.mxu0 %v652
        %v722 = vpop.f32.mrf.mxu0
        %v723 = vadd.f32 0.0, %v722
        %724 = vmatmul.f32.gmra.mxu0 %v655
        %v725 = vpop.f32.mrf.mxu0
        %v726 = vadd.f32 0.0, %v725
        %727 = vmatmul.f32.gmra.mxu0 %v658
        %v728 = vpop.f32.mrf.mxu0
        %v729 = vadd.f32 0.0, %v728
        %730 = vmatmul.f32.gmra.mxu0 %v661
        %v731 = vpop.f32.mrf.mxu0
        %v732 = vadd.f32 0.0, %v731
        %733 = vmatmul.f32.gmra.mxu0 %v664
        %v734 = vpop.f32.mrf.mxu0
        %v735 = vadd.f32 0.0, %v734
        %736 = vdwg.mxu0
        %v737 = vld [vmem:[#allocation2] sm:$0xff]
        %v738 = vld [vmem:[#allocation2 + $0x8] sm:$0xff]
        %v739 = vld [vmem:[#allocation2 + $0x10] sm:$0xff]
        %v740 = vld [vmem:[#allocation2 + $0x18] sm:$0xff]
        %v741 = vld [vmem:[#allocation2 + $0x20] sm:$0xff]
        %v742 = vld [vmem:[#allocation2 + $0x28] sm:$0xff]
        %v743 = vld [vmem:[#allocation2 + $0x30] sm:$0xff]
        %v744 = vld [vmem:[#allocation2 + $0x38] sm:$0xff]
        %v745 = vld [vmem:[#allocation2 + $0x40] sm:$0xff]
        %v746 = vld [vmem:[#allocation2 + $0x48] sm:$0xff]
        %v747 = vld [vmem:[#allocation2 + $0x50] sm:$0xff]
        %v748 = vld [vmem:[#allocation2 + $0x58] sm:$0xff]
        %v749 = vld [vmem:[#allocation2 + $0x60] sm:$0xff]
        %v750 = vld [vmem:[#allocation2 + $0x68] sm:$0xff]
        %v751 = vld [vmem:[#allocation2 + $0x70] sm:$0xff]
        %v752 = vld [vmem:[#allocation2 + $0x78] sm:$0xff]
        %v753 = vld [vmem:[#allocation2 + $0x80] sm:$0xff]
        %v754 = vld [vmem:[#allocation2 + $0x88] sm:$0xff]
        %v755 = vadd.f32 %v737, %v684
        %v756 = vadd.f32 %v738, %v687
        %v757 = vadd.f32 %v739, %v690
        %v758 = vadd.f32 %v740, %v693
        %v759 = vadd.f32 %v741, %v696
        %v760 = vadd.f32 %v742, %v699
        %v761 = vadd.f32 %v743, %v702
        %v762 = vadd.f32 %v744, %v705
        %v763 = vadd.f32 %v745, %v708
        %v764 = vadd.f32 %v746, %v711
        %v765 = vadd.f32 %v747, %v714
        %v766 = vadd.f32 %v748, %v717
        %v767 = vadd.f32 %v749, %v720
        %v768 = vadd.f32 %v750, %v723
        %v769 = vadd.f32 %v751, %v726
        %v770 = vadd.f32 %v752, %v729
        %v771 = vadd.f32 %v753, %v732
        %v772 = vadd.f32 %v754, %v735
        %773 = vst [vmem:[#allocation2] sm:$0xff] %v755
        %774 = vst [vmem:[#allocation2 + $0x8] sm:$0xff] %v756
        %775 = vst [vmem:[#allocation2 + $0x10] sm:$0xff] %v757
        %776 = vst [vmem:[#allocation2 + $0x18] sm:$0xff] %v758
        %777 = vst [vmem:[#allocation2 + $0x20] sm:$0xff] %v759
        %778 = vst [vmem:[#allocation2 + $0x28] sm:$0xff] %v760
        %779 = vst [vmem:[#allocation2 + $0x30] sm:$0xff] %v761
        %780 = vst [vmem:[#allocation2 + $0x38] sm:$0xff] %v762
        %781 = vst [vmem:[#allocation2 + $0x40] sm:$0xff] %v763
        %782 = vst [vmem:[#allocation2 + $0x48] sm:$0xff] %v764
        %783 = vst [vmem:[#allocation2 + $0x50] sm:$0xff] %v765
        %784 = vst [vmem:[#allocation2 + $0x58] sm:$0xff] %v766
        %785 = vst [vmem:[#allocation2 + $0x60] sm:$0xff] %v767
        %786 = vst [vmem:[#allocation2 + $0x68] sm:$0xff] %v768
        %787 = vst [vmem:[#allocation2 + $0x70] sm:$0xff] %v769
        %788 = vst [vmem:[#allocation2 + $0x78] sm:$0xff] %v770
        %789 = vst [vmem:[#allocation2 + $0x80] sm:$0xff] %v771
        %790 = vst [vmem:[#allocation2 + $0x88] sm:$0xff] %v772
        %s791 = sadd.s32 %s224, 18
        %s792 = scalar_lea.vmem %s215, %s791
        %v793 = vld [vmem:[%s792] sm:$0xff]
        %v794 = vld [vmem:[%s792 + $0x8] sm:$0xff]
        %v795 = vld [vmem:[%s792 + $0x10] sm:$0xff]
        %v796 = vld [vmem:[%s792 + $0x18] sm:$0xff]
        %v797 = vld [vmem:[%s792 + $0x20] sm:$0xff]
        %v798 = vld [vmem:[%s792 + $0x28] sm:$0xff]
        %v799 = vld [vmem:[%s792 + $0x30] sm:$0xff]
        %v800 = vld [vmem:[%s792 + $0x38] sm:$0xff]
        %v801 = vld [vmem:[%s792 + $0x40] sm:$0xff]
        %v802 = vld [vmem:[%s792 + $0x48] sm:$0xff]
        %v803 = vld [vmem:[%s792 + $0x50] sm:$0xff]
        %v804 = vld [vmem:[%s792 + $0x58] sm:$0xff]
        %v805 = vld [vmem:[%s792 + $0x60] sm:$0xff]
        %v806 = vld [vmem:[%s792 + $0x68] sm:$0xff]
        %v807 = vld [vmem:[%s792 + $0x70] sm:$0xff]
        %v808 = vld [vmem:[%s792 + $0x78] sm:$0xff]
        %v809 = vld [vmem:[%s792 + $0x80] sm:$0xff]
        %v810 = vld [vmem:[%s792 + $0x88] sm:$0xff]
        %s811 = scalar_lea.vmem %s219, 24
        %v812 = vld [vmem:[%s811] sm:$0xff]
        %v814 = vsel %vm245, %v793, 0
        %v817 = vsel %vm245, %v794, 0
        %v820 = vsel %vm245, %v795, 0
        %v823 = vsel %vm245, %v796, 0
        %v826 = vsel %vm245, %v797, 0
        %v829 = vsel %vm245, %v798, 0
        %v832 = vsel %vm245, %v799, 0
        %v835 = vsel %vm245, %v800, 0
        %v838 = vsel %vm245, %v801, 0
        %v841 = vsel %vm245, %v802, 0
        %v844 = vsel %vm245, %v803, 0
        %v847 = vsel %vm245, %v804, 0
        %v850 = vsel %vm245, %v805, 0
        %v853 = vsel %vm245, %v806, 0
        %v856 = vsel %vm245, %v807, 0
        %v859 = vsel %vm245, %v808, 0
        %v862 = vsel %vm245, %v809, 0
        %v865 = vsel %vm245, %v810, 0
        %867 = vmatpush.msra.mxu0 0.0
        %868 = vmatpush.msra.mxu0 0.0
        %869 = vmatpush.msra.mxu0 0.0
        %870 = vmatpush.msra.mxu0 0.0
        %871 = vmatpush.msra.mxu0 0.0
        %872 = vmatpush.msra.mxu0 0.0
        %873 = vmatpush.msra.mxu0 0.0
        %874 = vmatpush.msra.mxu0 0.0
        %875 = vmatpush.msra.mxu0 0.0
        %876 = vmatpush.msra.mxu0 0.0
        %877 = vmatpush.msra.mxu0 0.0
        %878 = vmatpush.msra.mxu0 0.0
        %879 = vmatpush.msra.mxu0 0.0
        %880 = vmatpush.msra.mxu0 0.0
        %881 = vmatpush.msra.mxu0 0.0
        %882 = vmatpush.msra.mxu0 %v812
        %883 = vmatmul.f32.gmra.mxu0 %v814
        %v884 = vpop.f32.mrf.mxu0
        %v885 = vadd.f32 0.0, %v884
        %886 = vmatmul.f32.gmra.mxu0 %v817
        %v887 = vpop.f32.mrf.mxu0
        %v888 = vadd.f32 0.0, %v887
        %889 = vmatmul.f32.gmra.mxu0 %v820
        %v890 = vpop.f32.mrf.mxu0
        %v891 = vadd.f32 0.0, %v890
        %892 = vmatmul.f32.gmra.mxu0 %v823
        %v893 = vpop.f32.mrf.mxu0
        %v894 = vadd.f32 0.0, %v893
        %895 = vmatmul.f32.gmra.mxu0 %v826
        %v896 = vpop.f32.mrf.mxu0
        %v897 = vadd.f32 0.0, %v896
        %898 = vmatmul.f32.gmra.mxu0 %v829
        %v899 = vpop.f32.mrf.mxu0
        %v900 = vadd.f32 0.0, %v899
        %901 = vmatmul.f32.gmra.mxu0 %v832
        %v902 = vpop.f32.mrf.mxu0
        %v903 = vadd.f32 0.0, %v902
        %904 = vmatmul.f32.gmra.mxu0 %v835
        %v905 = vpop.f32.mrf.mxu0
        %v906 = vadd.f32 0.0, %v905
        %907 = vmatmul.f32.gmra.mxu0 %v838
        %v908 = vpop.f32.mrf.mxu0
        %v909 = vadd.f32 0.0, %v908
        %910 = vmatmul.f32.gmra.mxu0 %v841
        %v911 = vpop.f32.mrf.mxu0
        %v912 = vadd.f32 0.0, %v911
        %913 = vmatmul.f32.gmra.mxu0 %v844
        %v914 = vpop.f32.mrf.mxu0
        %v915 = vadd.f32 0.0, %v914
        %916 = vmatmul.f32.gmra.mxu0 %v847
        %v917 = vpop.f32.mrf.mxu0
        %v918 = vadd.f32 0.0, %v917
        %919 = vmatmul.f32.gmra.mxu0 %v850
        %v920 = vpop.f32.mrf.mxu0
        %v921 = vadd.f32 0.0, %v920
        %922 = vmatmul.f32.gmra.mxu0 %v853
        %v923 = vpop.f32.mrf.mxu0
        %v924 = vadd.f32 0.0, %v923
        %925 = vmatmul.f32.gmra.mxu0 %v856
        %v926 = vpop.f32.mrf.mxu0
        %v927 = vadd.f32 0.0, %v926
        %928 = vmatmul.f32.gmra.mxu0 %v859
        %v929 = vpop.f32.mrf.mxu0
        %v930 = vadd.f32 0.0, %v929
        %931 = vmatmul.f32.gmra.mxu0 %v862
        %v932 = vpop.f32.mrf.mxu0
        %v933 = vadd.f32 0.0, %v932
        %934 = vmatmul.f32.gmra.mxu0 %v865
        %v935 = vpop.f32.mrf.mxu0
        %v936 = vadd.f32 0.0, %v935
        %937 = vdwg.mxu0
        %v938 = vld [vmem:[#allocation2] sm:$0xff]
        %v939 = vld [vmem:[#allocation2 + $0x8] sm:$0xff]
        %v940 = vld [vmem:[#allocation2 + $0x10] sm:$0xff]
        %v941 = vld [vmem:[#allocation2 + $0x18] sm:$0xff]
        %v942 = vld [vmem:[#allocation2 + $0x20] sm:$0xff]
        %v943 = vld [vmem:[#allocation2 + $0x28] sm:$0xff]
        %v944 = vld [vmem:[#allocation2 + $0x30] sm:$0xff]
        %v945 = vld [vmem:[#allocation2 + $0x38] sm:$0xff]
        %v946 = vld [vmem:[#allocation2 + $0x40] sm:$0xff]
        %v947 = vld [vmem:[#allocation2 + $0x48] sm:$0xff]
        %v948 = vld [vmem:[#allocation2 + $0x50] sm:$0xff]
        %v949 = vld [vmem:[#allocation2 + $0x58] sm:$0xff]
        %v950 = vld [vmem:[#allocation2 + $0x60] sm:$0xff]
        %v951 = vld [vmem:[#allocation2 + $0x68] sm:$0xff]
        %v952 = vld [vmem:[#allocation2 + $0x70] sm:$0xff]
        %v953 = vld [vmem:[#allocation2 + $0x78] sm:$0xff]
        %v954 = vld [vmem:[#allocation2 + $0x80] sm:$0xff]
        %v955 = vld [vmem:[#allocation2 + $0x88] sm:$0xff]
        %v956 = vadd.f32 %v938, %v885
        %v957 = vadd.f32 %v939, %v888
        %v958 = vadd.f32 %v940, %v891
        %v959 = vadd.f32 %v941, %v894
        %v960 = vadd.f32 %v942, %v897
        %v961 = vadd.f32 %v943, %v900
        %v962 = vadd.f32 %v944, %v903
        %v963 = vadd.f32 %v945, %v906
        %v964 = vadd.f32 %v946, %v909
        %v965 = vadd.f32 %v947, %v912
        %v966 = vadd.f32 %v948, %v915
        %v967 = vadd.f32 %v949, %v918
        %v968 = vadd.f32 %v950, %v921
        %v969 = vadd.f32 %v951, %v924
        %v970 = vadd.f32 %v952, %v927
        %v971 = vadd.f32 %v953, %v930
        %v972 = vadd.f32 %v954, %v933
        %v973 = vadd.f32 %v955, %v936
        %974 = vst [vmem:[#allocation2] sm:$0xff] %v956
        %975 = vst [vmem:[#allocation2 + $0x8] sm:$0xff] %v957
        %976 = vst [vmem:[#allocation2 + $0x10] sm:$0xff] %v958
        %977 = vst [vmem:[#allocation2 + $0x18] sm:$0xff] %v959
        %978 = vst [vmem:[#allocation2 + $0x20] sm:$0xff] %v960
        %979 = vst [vmem:[#allocation2 + $0x28] sm:$0xff] %v961
        %980 = vst [vmem:[#allocation2 + $0x30] sm:$0xff] %v962
        %981 = vst [vmem:[#allocation2 + $0x38] sm:$0xff] %v963
        %982 = vst [vmem:[#allocation2 + $0x40] sm:$0xff] %v964
        %983 = vst [vmem:[#allocation2 + $0x48] sm:$0xff] %v965
        %984 = vst [vmem:[#allocation2 + $0x50] sm:$0xff] %v966
        %985 = vst [vmem:[#allocation2 + $0x58] sm:$0xff] %v967
        %986 = vst [vmem:[#allocation2 + $0x60] sm:$0xff] %v968
        %987 = vst [vmem:[#allocation2 + $0x68] sm:$0xff] %v969
        %988 = vst [vmem:[#allocation2 + $0x70] sm:$0xff] %v970
        %989 = vst [vmem:[#allocation2 + $0x78] sm:$0xff] %v971
        %990 = vst [vmem:[#allocation2 + $0x80] sm:$0xff] %v972
        %991 = vst [vmem:[#allocation2 + $0x88] sm:$0xff] %v973
        %s992 = sadd.s32 %s224, 19
        %s993 = scalar_lea.vmem %s215, %s992
        %v994 = vld [vmem:[%s993] sm:$0xff]
        %v995 = vld [vmem:[%s993 + $0x8] sm:$0xff]
        %v996 = vld [vmem:[%s993 + $0x10] sm:$0xff]
        %v997 = vld [vmem:[%s993 + $0x18] sm:$0xff]
        %v998 = vld [vmem:[%s993 + $0x20] sm:$0xff]
        %v999 = vld [vmem:[%s993 + $0x28] sm:$0xff]
        %v1000 = vld [vmem:[%s993 + $0x30] sm:$0xff]
        %v1001 = vld [vmem:[%s993 + $0x38] sm:$0xff]
        %v1002 = vld [vmem:[%s993 + $0x40] sm:$0xff]
        %v1003 = vld [vmem:[%s993 + $0x48] sm:$0xff]
        %v1004 = vld [vmem:[%s993 + $0x50] sm:$0xff]
        %v1005 = vld [vmem:[%s993 + $0x58] sm:$0xff]
        %v1006 = vld [vmem:[%s993 + $0x60] sm:$0xff]
        %v1007 = vld [vmem:[%s993 + $0x68] sm:$0xff]
        %v1008 = vld [vmem:[%s993 + $0x70] sm:$0xff]
        %v1009 = vld [vmem:[%s993 + $0x78] sm:$0xff]
        %v1010 = vld [vmem:[%s993 + $0x80] sm:$0xff]
        %v1011 = vld [vmem:[%s993 + $0x88] sm:$0xff]
        %s1012 = scalar_lea.vmem %s219, 32
        %v1013 = vld [vmem:[%s1012] sm:$0xff]
        %v1015 = vsel %vm245, %v994, 0
        %v1018 = vsel %vm245, %v995, 0
        %v1021 = vsel %vm245, %v996, 0
        %v1024 = vsel %vm245, %v997, 0
        %v1027 = vsel %vm245, %v998, 0
        %v1030 = vsel %vm245, %v999, 0
        %v1033 = vsel %vm245, %v1000, 0
        %v1036 = vsel %vm245, %v1001, 0
        %v1039 = vsel %vm245, %v1002, 0
        %v1042 = vsel %vm245, %v1003, 0
        %v1045 = vsel %vm245, %v1004, 0
        %v1048 = vsel %vm245, %v1005, 0
        %v1051 = vsel %vm245, %v1006, 0
        %v1054 = vsel %vm245, %v1007, 0
        %v1057 = vsel %vm245, %v1008, 0
        %v1060 = vsel %vm245, %v1009, 0
        %v1063 = vsel %vm245, %v1010, 0
        %v1066 = vsel %vm245, %v1011, 0
        %1068 = vmatpush.msra.mxu0 0.0
        %1069 = vmatpush.msra.mxu0 0.0
        %1070 = vmatpush.msra.mxu0 0.0
        %1071 = vmatpush.msra.mxu0 0.0
        %1072 = vmatpush.msra.mxu0 0.0
        %1073 = vmatpush.msra.mxu0 0.0
        %1074 = vmatpush.msra.mxu0 0.0
        %1075 = vmatpush.msra.mxu0 0.0
        %1076 = vmatpush.msra.mxu0 0.0
        %1077 = vmatpush.msra.mxu0 0.0
        %1078 = vmatpush.msra.mxu0 0.0
        %1079 = vmatpush.msra.mxu0 0.0
        %1080 = vmatpush.msra.mxu0 0.0
        %1081 = vmatpush.msra.mxu0 0.0
        %1082 = vmatpush.msra.mxu0 0.0
        %1083 = vmatpush.msra.mxu0 %v1013
        %1084 = vmatmul.f32.gmra.mxu0 %v1015
        %v1085 = vpop.f32.mrf.mxu0
        %v1086 = vadd.f32 0.0, %v1085
        %1087 = vmatmul.f32.gmra.mxu0 %v1018
        %v1088 = vpop.f32.mrf.mxu0
        %v1089 = vadd.f32 0.0, %v1088
        %1090 = vmatmul.f32.gmra.mxu0 %v1021
        %v1091 = vpop.f32.mrf.mxu0
        %v1092 = vadd.f32 0.0, %v1091
        %1093 = vmatmul.f32.gmra.mxu0 %v1024
        %v1094 = vpop.f32.mrf.mxu0
        %v1095 = vadd.f32 0.0, %v1094
        %1096 = vmatmul.f32.gmra.mxu0 %v1027
        %v1097 = vpop.f32.mrf.mxu0
        %v1098 = vadd.f32 0.0, %v1097
        %1099 = vmatmul.f32.gmra.mxu0 %v1030
        %v1100 = vpop.f32.mrf.mxu0
        %v1101 = vadd.f32 0.0, %v1100
        %1102 = vmatmul.f32.gmra.mxu0 %v1033
        %v1103 = vpop.f32.mrf.mxu0
        %v1104 = vadd.f32 0.0, %v1103
        %1105 = vmatmul.f32.gmra.mxu0 %v1036
        %v1106 = vpop.f32.mrf.mxu0
        %v1107 = vadd.f32 0.0, %v1106
        %1108 = vmatmul.f32.gmra.mxu0 %v1039
        %v1109 = vpop.f32.mrf.mxu0
        %v1110 = vadd.f32 0.0, %v1109
        %1111 = vmatmul.f32.gmra.mxu0 %v1042
        %v1112 = vpop.f32.mrf.mxu0
        %v1113 = vadd.f32 0.0, %v1112
        %1114 = vmatmul.f32.gmra.mxu0 %v1045
        %v1115 = vpop.f32.mrf.mxu0
        %v1116 = vadd.f32 0.0, %v1115
        %1117 = vmatmul.f32.gmra.mxu0 %v1048
        %v1118 = vpop.f32.mrf.mxu0
        %v1119 = vadd.f32 0.0, %v1118
        %1120 = vmatmul.f32.gmra.mxu0 %v1051
        %v1121 = vpop.f32.mrf.mxu0
        %v1122 = vadd.f32 0.0, %v1121
        %1123 = vmatmul.f32.gmra.mxu0 %v1054
        %v1124 = vpop.f32.mrf.mxu0
        %v1125 = vadd.f32 0.0, %v1124
        %1126 = vmatmul.f32.gmra.mxu0 %v1057
        %v1127 = vpop.f32.mrf.mxu0
        %v1128 = vadd.f32 0.0, %v1127
        %1129 = vmatmul.f32.gmra.mxu0 %v1060
        %v1130 = vpop.f32.mrf.mxu0
        %v1131 = vadd.f32 0.0, %v1130
        %1132 = vmatmul.f32.gmra.mxu0 %v1063
        %v1133 = vpop.f32.mrf.mxu0
        %v1134 = vadd.f32 0.0, %v1133
        %1135 = vmatmul.f32.gmra.mxu0 %v1066
        %v1136 = vpop.f32.mrf.mxu0
        %v1137 = vadd.f32 0.0, %v1136
        %1138 = vdwg.mxu0
        %v1139 = vld [vmem:[#allocation2] sm:$0xff]
        %v1140 = vld [vmem:[#allocation2 + $0x8] sm:$0xff]
        %v1141 = vld [vmem:[#allocation2 + $0x10] sm:$0xff]
        %v1142 = vld [vmem:[#allocation2 + $0x18] sm:$0xff]
        %v1143 = vld [vmem:[#allocation2 + $0x20] sm:$0xff]
        %v1144 = vld [vmem:[#allocation2 + $0x28] sm:$0xff]
        %v1145 = vld [vmem:[#allocation2 + $0x30] sm:$0xff]
        %v1146 = vld [vmem:[#allocation2 + $0x38] sm:$0xff]
        %v1147 = vld [vmem:[#allocation2 + $0x40] sm:$0xff]
        %v1148 = vld [vmem:[#allocation2 + $0x48] sm:$0xff]
        %v1149 = vld [vmem:[#allocation2 + $0x50] sm:$0xff]
        %v1150 = vld [vmem:[#allocation2 + $0x58] sm:$0xff]
        %v1151 = vld [vmem:[#allocation2 + $0x60] sm:$0xff]
        %v1152 = vld [vmem:[#allocation2 + $0x68] sm:$0xff]
        %v1153 = vld [vmem:[#allocation2 + $0x70] sm:$0xff]
        %v1154 = vld [vmem:[#allocation2 + $0x78] sm:$0xff]
        %v1155 = vld [vmem:[#allocation2 + $0x80] sm:$0xff]
        %v1156 = vld [vmem:[#allocation2 + $0x88] sm:$0xff]
        %v1157 = vadd.f32 %v1139, %v1086
        %v1158 = vadd.f32 %v1140, %v1089
        %v1159 = vadd.f32 %v1141, %v1092
        %v1160 = vadd.f32 %v1142, %v1095
        %v1161 = vadd.f32 %v1143, %v1098
        %v1162 = vadd.f32 %v1144, %v1101
        %v1163 = vadd.f32 %v1145, %v1104
        %v1164 = vadd.f32 %v1146, %v1107
        %v1165 = vadd.f32 %v1147, %v1110
        %v1166 = vadd.f32 %v1148, %v1113
        %v1167 = vadd.f32 %v1149, %v1116
        %v1168 = vadd.f32 %v1150, %v1119
        %v1169 = vadd.f32 %v1151, %v1122
        %v1170 = vadd.f32 %v1152, %v1125
        %v1171 = vadd.f32 %v1153, %v1128
        %v1172 = vadd.f32 %v1154, %v1131
        %v1173 = vadd.f32 %v1155, %v1134
        %v1174 = vadd.f32 %v1156, %v1137
        %1175 = vst [vmem:[#allocation2] sm:$0xff] %v1157
        %1176 = vst [vmem:[#allocation2 + $0x8] sm:$0xff] %v1158
        %1177 = vst [vmem:[#allocation2 + $0x10] sm:$0xff] %v1159
        %1178 = vst [vmem:[#allocation2 + $0x18] sm:$0xff] %v1160
        %1179 = vst [vmem:[#allocation2 + $0x20] sm:$0xff] %v1161
        %1180 = vst [vmem:[#allocation2 + $0x28] sm:$0xff] %v1162
        %1181 = vst [vmem:[#allocation2 + $0x30] sm:$0xff] %v1163
        %1182 = vst [vmem:[#allocation2 + $0x38] sm:$0xff] %v1164
        %1183 = vst [vmem:[#allocation2 + $0x40] sm:$0xff] %v1165
        %1184 = vst [vmem:[#allocation2 + $0x48] sm:$0xff] %v1166
        %1185 = vst [vmem:[#allocation2 + $0x50] sm:$0xff] %v1167
        %1186 = vst [vmem:[#allocation2 + $0x58] sm:$0xff] %v1168
        %1187 = vst [vmem:[#allocation2 + $0x60] sm:$0xff] %v1169
        %1188 = vst [vmem:[#allocation2 + $0x68] sm:$0xff] %v1170
        %1189 = vst [vmem:[#allocation2 + $0x70] sm:$0xff] %v1171
        %1190 = vst [vmem:[#allocation2 + $0x78] sm:$0xff] %v1172
        %1191 = vst [vmem:[#allocation2 + $0x80] sm:$0xff] %v1173
        %1192 = vst [vmem:[#allocation2 + $0x88] sm:$0xff] %v1174
        %s1193 = sadd.s32 %s224, 20
        %s1194 = scalar_lea.vmem %s215, %s1193
        %v1195 = vld [vmem:[%s1194] sm:$0xff]
        %v1196 = vld [vmem:[%s1194 + $0x8] sm:$0xff]
        %v1197 = vld [vmem:[%s1194 + $0x10] sm:$0xff]
        %v1198 = vld [vmem:[%s1194 + $0x18] sm:$0xff]
        %v1199 = vld [vmem:[%s1194 + $0x20] sm:$0xff]
        %v1200 = vld [vmem:[%s1194 + $0x28] sm:$0xff]
        %v1201 = vld [vmem:[%s1194 + $0x30] sm:$0xff]
        %v1202 = vld [vmem:[%s1194 + $0x38] sm:$0xff]
        %v1203 = vld [vmem:[%s1194 + $0x40] sm:$0xff]
        %v1204 = vld [vmem:[%s1194 + $0x48] sm:$0xff]
        %v1205 = vld [vmem:[%s1194 + $0x50] sm:$0xff]
        %v1206 = vld [vmem:[%s1194 + $0x58] sm:$0xff]
        %v1207 = vld [vmem:[%s1194 + $0x60] sm:$0xff]
        %v1208 = vld [vmem:[%s1194 + $0x68] sm:$0xff]
        %v1209 = vld [vmem:[%s1194 + $0x70] sm:$0xff]
        %v1210 = vld [vmem:[%s1194 + $0x78] sm:$0xff]
        %v1211 = vld [vmem:[%s1194 + $0x80] sm:$0xff]
        %v1212 = vld [vmem:[%s1194 + $0x88] sm:$0xff]
        %s1213 = scalar_lea.vmem %s219, 40
        %v1214 = vld [vmem:[%s1213] sm:$0xff]
        %v1216 = vsel %vm245, %v1195, 0
        %v1219 = vsel %vm245, %v1196, 0
        %v1222 = vsel %vm245, %v1197, 0
        %v1225 = vsel %vm245, %v1198, 0
        %v1228 = vsel %vm245, %v1199, 0
        %v1231 = vsel %vm245, %v1200, 0
        %v1234 = vsel %vm245, %v1201, 0
        %v1237 = vsel %vm245, %v1202, 0
        %v1240 = vsel %vm245, %v1203, 0
        %v1243 = vsel %vm245, %v1204, 0
        %v1246 = vsel %vm245, %v1205, 0
        %v1249 = vsel %vm245, %v1206, 0
        %v1252 = vsel %vm245, %v1207, 0
        %v1255 = vsel %vm245, %v1208, 0
        %v1258 = vsel %vm245, %v1209, 0
        %v1261 = vsel %vm245, %v1210, 0
        %v1264 = vsel %vm245, %v1211, 0
        %v1267 = vsel %vm245, %v1212, 0
        %1269 = vmatpush.msra.mxu0 0.0
        %1270 = vmatpush.msra.mxu0 0.0
        %1271 = vmatpush.msra.mxu0 0.0
        %1272 = vmatpush.msra.mxu0 0.0
        %1273 = vmatpush.msra.mxu0 0.0
        %1274 = vmatpush.msra.mxu0 0.0
        %1275 = vmatpush.msra.mxu0 0.0
        %1276 = vmatpush.msra.mxu0 0.0
        %1277 = vmatpush.msra.mxu0 0.0
        %1278 = vmatpush.msra.mxu0 0.0
        %1279 = vmatpush.msra.mxu0 0.0
        %1280 = vmatpush.msra.mxu0 0.0
        %1281 = vmatpush.msra.mxu0 0.0
        %1282 = vmatpush.msra.mxu0 0.0
        %1283 = vmatpush.msra.mxu0 0.0
        %1284 = vmatpush.msra.mxu0 %v1214
        %1285 = vmatmul.f32.gmra.mxu0 %v1216
        %v1286 = vpop.f32.mrf.mxu0
        %v1287 = vadd.f32 0.0, %v1286
        %1288 = vmatmul.f32.gmra.mxu0 %v1219
        %v1289 = vpop.f32.mrf.mxu0
        %v1290 = vadd.f32 0.0, %v1289
        %1291 = vmatmul.f32.gmra.mxu0 %v1222
        %v1292 = vpop.f32.mrf.mxu0
        %v1293 = vadd.f32 0.0, %v1292
        %1294 = vmatmul.f32.gmra.mxu0 %v1225
        %v1295 = vpop.f32.mrf.mxu0
        %v1296 = vadd.f32 0.0, %v1295
        %1297 = vmatmul.f32.gmra.mxu0 %v1228
        %v1298 = vpop.f32.mrf.mxu0
        %v1299 = vadd.f32 0.0, %v1298
        %1300 = vmatmul.f32.gmra.mxu0 %v1231
        %v1301 = vpop.f32.mrf.mxu0
        %v1302 = vadd.f32 0.0, %v1301
        %1303 = vmatmul.f32.gmra.mxu0 %v1234
        %v1304 = vpop.f32.mrf.mxu0
        %v1305 = vadd.f32 0.0, %v1304
        %1306 = vmatmul.f32.gmra.mxu0 %v1237
        %v1307 = vpop.f32.mrf.mxu0
        %v1308 = vadd.f32 0.0, %v1307
        %1309 = vmatmul.f32.gmra.mxu0 %v1240
        %v1310 = vpop.f32.mrf.mxu0
        %v1311 = vadd.f32 0.0, %v1310
        %1312 = vmatmul.f32.gmra.mxu0 %v1243
        %v1313 = vpop.f32.mrf.mxu0
        %v1314 = vadd.f32 0.0, %v1313
        %1315 = vmatmul.f32.gmra.mxu0 %v1246
        %v1316 = vpop.f32.mrf.mxu0
        %v1317 = vadd.f32 0.0, %v1316
        %1318 = vmatmul.f32.gmra.mxu0 %v1249
        %v1319 = vpop.f32.mrf.mxu0
        %v1320 = vadd.f32 0.0, %v1319
        %1321 = vmatmul.f32.gmra.mxu0 %v1252
        %v1322 = vpop.f32.mrf.mxu0
        %v1323 = vadd.f32 0.0, %v1322
        %1324 = vmatmul.f32.gmra.mxu0 %v1255
        %v1325 = vpop.f32.mrf.mxu0
        %v1326 = vadd.f32 0.0, %v1325
        %1327 = vmatmul.f32.gmra.mxu0 %v1258
        %v1328 = vpop.f32.mrf.mxu0
        %v1329 = vadd.f32 0.0, %v1328
        %1330 = vmatmul.f32.gmra.mxu0 %v1261
        %v1331 = vpop.f32.mrf.mxu0
        %v1332 = vadd.f32 0.0, %v1331
        %1333 = vmatmul.f32.gmra.mxu0 %v1264
        %v1334 = vpop.f32.mrf.mxu0
        %v1335 = vadd.f32 0.0, %v1334
        %1336 = vmatmul.f32.gmra.mxu0 %v1267
        %v1337 = vpop.f32.mrf.mxu0
        %v1338 = vadd.f32 0.0, %v1337
        %1339 = vdwg.mxu0
        %v1340 = vld [vmem:[#allocation2] sm:$0xff]
        %v1341 = vld [vmem:[#allocation2 + $0x8] sm:$0xff]
        %v1342 = vld [vmem:[#allocation2 + $0x10] sm:$0xff]
        %v1343 = vld [vmem:[#allocation2 + $0x18] sm:$0xff]
        %v1344 = vld [vmem:[#allocation2 + $0x20] sm:$0xff]
        %v1345 = vld [vmem:[#allocation2 + $0x28] sm:$0xff]
        %v1346 = vld [vmem:[#allocation2 + $0x30] sm:$0xff]
        %v1347 = vld [vmem:[#allocation2 + $0x38] sm:$0xff]
        %v1348 = vld [vmem:[#allocation2 + $0x40] sm:$0xff]
        %v1349 = vld [vmem:[#allocation2 + $0x48] sm:$0xff]
        %v1350 = vld [vmem:[#allocation2 + $0x50] sm:$0xff]
        %v1351 = vld [vmem:[#allocation2 + $0x58] sm:$0xff]
        %v1352 = vld [vmem:[#allocation2 + $0x60] sm:$0xff]
        %v1353 = vld [vmem:[#allocation2 + $0x68] sm:$0xff]
        %v1354 = vld [vmem:[#allocation2 + $0x70] sm:$0xff]
        %v1355 = vld [vmem:[#allocation2 + $0x78] sm:$0xff]
        %v1356 = vld [vmem:[#allocation2 + $0x80] sm:$0xff]
        %v1357 = vld [vmem:[#allocation2 + $0x88] sm:$0xff]
        %v1358 = vadd.f32 %v1340, %v1287
        %v1359 = vadd.f32 %v1341, %v1290
        %v1360 = vadd.f32 %v1342, %v1293
        %v1361 = vadd.f32 %v1343, %v1296
        %v1362 = vadd.f32 %v1344, %v1299
        %v1363 = vadd.f32 %v1345, %v1302
        %v1364 = vadd.f32 %v1346, %v1305
        %v1365 = vadd.f32 %v1347, %v1308
        %v1366 = vadd.f32 %v1348, %v1311
        %v1367 = vadd.f32 %v1349, %v1314
        %v1368 = vadd.f32 %v1350, %v1317
        %v1369 = vadd.f32 %v1351, %v1320
        %v1370 = vadd.f32 %v1352, %v1323
        %v1371 = vadd.f32 %v1353, %v1326
        %v1372 = vadd.f32 %v1354, %v1329
        %v1373 = vadd.f32 %v1355, %v1332
        %v1374 = vadd.f32 %v1356, %v1335
        %v1375 = vadd.f32 %v1357, %v1338
        %1376 = vst [vmem:[#allocation2] sm:$0xff] %v1358
        %1377 = vst [vmem:[#allocation2 + $0x8] sm:$0xff] %v1359
        %1378 = vst [vmem:[#allocation2 + $0x10] sm:$0xff] %v1360
        %1379 = vst [vmem:[#allocation2 + $0x18] sm:$0xff] %v1361
        %1380 = vst [vmem:[#allocation2 + $0x20] sm:$0xff] %v1362
        %1381 = vst [vmem:[#allocation2 + $0x28] sm:$0xff] %v1363
        %1382 = vst [vmem:[#allocation2 + $0x30] sm:$0xff] %v1364
        %1383 = vst [vmem:[#allocation2 + $0x38] sm:$0xff] %v1365
        %1384 = vst [vmem:[#allocation2 + $0x40] sm:$0xff] %v1366
        %1385 = vst [vmem:[#allocation2 + $0x48] sm:$0xff] %v1367
        %1386 = vst [vmem:[#allocation2 + $0x50] sm:$0xff] %v1368
        %1387 = vst [vmem:[#allocation2 + $0x58] sm:$0xff] %v1369
        %1388 = vst [vmem:[#allocation2 + $0x60] sm:$0xff] %v1370
        %1389 = vst [vmem:[#allocation2 + $0x68] sm:$0xff] %v1371
        %1390 = vst [vmem:[#allocation2 + $0x70] sm:$0xff] %v1372
        %1391 = vst [vmem:[#allocation2 + $0x78] sm:$0xff] %v1373
        %1392 = vst [vmem:[#allocation2 + $0x80] sm:$0xff] %v1374
        %1393 = vst [vmem:[#allocation2 + $0x88] sm:$0xff] %v1375
        %s1394 = sadd.s32 %s224, 36
        %s1395 = scalar_lea.vmem %s215, %s1394
        %v1396 = vld [vmem:[%s1395] sm:$0xff]
        %v1397 = vld [vmem:[%s1395 + $0x8] sm:$0xff]
        %v1398 = vld [vmem:[%s1395 + $0x10] sm:$0xff]
        %v1399 = vld [vmem:[%s1395 + $0x18] sm:$0xff]
        %v1400 = vld [vmem:[%s1395 + $0x20] sm:$0xff]
        %v1401 = vld [vmem:[%s1395 + $0x28] sm:$0xff]
        %v1402 = vld [vmem:[%s1395 + $0x30] sm:$0xff]
        %v1403 = vld [vmem:[%s1395 + $0x38] sm:$0xff]
        %v1404 = vld [vmem:[%s1395 + $0x40] sm:$0xff]
        %v1405 = vld [vmem:[%s1395 + $0x48] sm:$0xff]
        %v1406 = vld [vmem:[%s1395 + $0x50] sm:$0xff]
        %v1407 = vld [vmem:[%s1395 + $0x58] sm:$0xff]
        %v1408 = vld [vmem:[%s1395 + $0x60] sm:$0xff]
        %v1409 = vld [vmem:[%s1395 + $0x68] sm:$0xff]
        %v1410 = vld [vmem:[%s1395 + $0x70] sm:$0xff]
        %v1411 = vld [vmem:[%s1395 + $0x78] sm:$0xff]
        %v1412 = vld [vmem:[%s1395 + $0x80] sm:$0xff]
        %v1413 = vld [vmem:[%s1395 + $0x88] sm:$0xff]
        %s1414 = scalar_lea.vmem %s219, 48
        %v1415 = vld [vmem:[%s1414] sm:$0xff]
        %v1417 = vsel %vm245, %v1396, 0
        %v1420 = vsel %vm245, %v1397, 0
        %v1423 = vsel %vm245, %v1398, 0
        %v1426 = vsel %vm245, %v1399, 0
        %v1429 = vsel %vm245, %v1400, 0
        %v1432 = vsel %vm245, %v1401, 0
        %v1435 = vsel %vm245, %v1402, 0
        %v1438 = vsel %vm245, %v1403, 0
        %v1441 = vsel %vm245, %v1404, 0
        %v1444 = vsel %vm245, %v1405, 0
        %v1447 = vsel %vm245, %v1406, 0
        %v1450 = vsel %vm245, %v1407, 0
        %v1453 = vsel %vm245, %v1408, 0
        %v1456 = vsel %vm245, %v1409, 0
        %v1459 = vsel %vm245, %v1410, 0
        %v1462 = vsel %vm245, %v1411, 0
        %v1465 = vsel %vm245, %v1412, 0
        %v1468 = vsel %vm245, %v1413, 0
        %1470 = vmatpush.msra.mxu0 0.0
        %1471 = vmatpush.msra.mxu0 0.0
        %1472 = vmatpush.msra.mxu0 0.0
        %1473 = vmatpush.msra.mxu0 0.0
        %1474 = vmatpush.msra.mxu0 0.0
        %1475 = vmatpush.msra.mxu0 0.0
        %1476 = vmatpush.msra.mxu0 0.0
        %1477 = vmatpush.msra.mxu0 0.0
        %1478 = vmatpush.msra.mxu0 0.0
        %1479 = vmatpush.msra.mxu0 0.0
        %1480 = vmatpush.msra.mxu0 0.0
        %1481 = vmatpush.msra.mxu0 0.0
        %1482 = vmatpush.msra.mxu0 0.0
        %1483 = vmatpush.msra.mxu0 0.0
        %1484 = vmatpush.msra.mxu0 0.0
        %1485 = vmatpush.msra.mxu0 %v1415
        %1486 = vmatmul.f32.gmra.mxu0 %v1417
        %v1487 = vpop.f32.mrf.mxu0
        %v1488 = vadd.f32 0.0, %v1487
        %1489 = vmatmul.f32.gmra.mxu0 %v1420
        %v1490 = vpop.f32.mrf.mxu0
        %v1491 = vadd.f32 0.0, %v1490
        %1492 = vmatmul.f32.gmra.mxu0 %v1423
        %v1493 = vpop.f32.mrf.mxu0
        %v1494 = vadd.f32 0.0, %v1493
        %1495 = vmatmul.f32.gmra.mxu0 %v1426
        %v1496 = vpop.f32.mrf.mxu0
        %v1497 = vadd.f32 0.0, %v1496
        %1498 = vmatmul.f32.gmra.mxu0 %v1429
        %v1499 = vpop.f32.mrf.mxu0
        %v1500 = vadd.f32 0.0, %v1499
        %1501 = vmatmul.f32.gmra.mxu0 %v1432
        %v1502 = vpop.f32.mrf.mxu0
        %v1503 = vadd.f32 0.0, %v1502
        %1504 = vmatmul.f32.gmra.mxu0 %v1435
        %v1505 = vpop.f32.mrf.mxu0
        %v1506 = vadd.f32 0.0, %v1505
        %1507 = vmatmul.f32.gmra.mxu0 %v1438
        %v1508 = vpop.f32.mrf.mxu0
        %v1509 = vadd.f32 0.0, %v1508
        %1510 = vmatmul.f32.gmra.mxu0 %v1441
        %v1511 = vpop.f32.mrf.mxu0
        %v1512 = vadd.f32 0.0, %v1511
        %1513 = vmatmul.f32.gmra.mxu0 %v1444
        %v1514 = vpop.f32.mrf.mxu0
        %v1515 = vadd.f32 0.0, %v1514
        %1516 = vmatmul.f32.gmra.mxu0 %v1447
        %v1517 = vpop.f32.mrf.mxu0
        %v1518 = vadd.f32 0.0, %v1517
        %1519 = vmatmul.f32.gmra.mxu0 %v1450
        %v1520 = vpop.f32.mrf.mxu0
        %v1521 = vadd.f32 0.0, %v1520
        %1522 = vmatmul.f32.gmra.mxu0 %v1453
        %v1523 = vpop.f32.mrf.mxu0
        %v1524 = vadd.f32 0.0, %v1523
        %1525 = vmatmul.f32.gmra.mxu0 %v1456
        %v1526 = vpop.f32.mrf.mxu0
        %v1527 = vadd.f32 0.0, %v1526
        %1528 = vmatmul.f32.gmra.mxu0 %v1459
        %v1529 = vpop.f32.mrf.mxu0
        %v1530 = vadd.f32 0.0, %v1529
        %1531 = vmatmul.f32.gmra.mxu0 %v1462
        %v1532 = vpop.f32.mrf.mxu0
        %v1533 = vadd.f32 0.0, %v1532
        %1534 = vmatmul.f32.gmra.mxu0 %v1465
        %v1535 = vpop.f32.mrf.mxu0
        %v1536 = vadd.f32 0.0, %v1535
        %1537 = vmatmul.f32.gmra.mxu0 %v1468
        %v1538 = vpop.f32.mrf.mxu0
        %v1539 = vadd.f32 0.0, %v1538
        %1540 = vdwg.mxu0
        %v1541 = vld [vmem:[#allocation2] sm:$0xff]
        %v1542 = vld [vmem:[#allocation2 + $0x8] sm:$0xff]
        %v1543 = vld [vmem:[#allocation2 + $0x10] sm:$0xff]
        %v1544 = vld [vmem:[#allocation2 + $0x18] sm:$0xff]
        %v1545 = vld [vmem:[#allocation2 + $0x20] sm:$0xff]
        %v1546 = vld [vmem:[#allocation2 + $0x28] sm:$0xff]
        %v1547 = vld [vmem:[#allocation2 + $0x30] sm:$0xff]
        %v1548 = vld [vmem:[#allocation2 + $0x38] sm:$0xff]
        %v1549 = vld [vmem:[#allocation2 + $0x40] sm:$0xff]
        %v1550 = vld [vmem:[#allocation2 + $0x48] sm:$0xff]
        %v1551 = vld [vmem:[#allocation2 + $0x50] sm:$0xff]
        %v1552 = vld [vmem:[#allocation2 + $0x58] sm:$0xff]
        %v1553 = vld [vmem:[#allocation2 + $0x60] sm:$0xff]
        %v1554 = vld [vmem:[#allocation2 + $0x68] sm:$0xff]
        %v1555 = vld [vmem:[#allocation2 + $0x70] sm:$0xff]
        %v1556 = vld [vmem:[#allocation2 + $0x78] sm:$0xff]
        %v1557 = vld [vmem:[#allocation2 + $0x80] sm:$0xff]
        %v1558 = vld [vmem:[#allocation2 + $0x88] sm:$0xff]
        %v1559 = vadd.f32 %v1541, %v1488
        %v1560 = vadd.f32 %v1542, %v1491
        %v1561 = vadd.f32 %v1543, %v1494
        %v1562 = vadd.f32 %v1544, %v1497
        %v1563 = vadd.f32 %v1545, %v1500
        %v1564 = vadd.f32 %v1546, %v1503
        %v1565 = vadd.f32 %v1547, %v1506
        %v1566 = vadd.f32 %v1548, %v1509
        %v1567 = vadd.f32 %v1549, %v1512
        %v1568 = vadd.f32 %v1550, %v1515
        %v1569 = vadd.f32 %v1551, %v1518
        %v1570 = vadd.f32 %v1552, %v1521
        %v1571 = vadd.f32 %v1553, %v1524
        %v1572 = vadd.f32 %v1554, %v1527
        %v1573 = vadd.f32 %v1555, %v1530
        %v1574 = vadd.f32 %v1556, %v1533
        %v1575 = vadd.f32 %v1557, %v1536
        %v1576 = vadd.f32 %v1558, %v1539
        %1577 = vst [vmem:[#allocation2] sm:$0xff] %v1559
        %1578 = vst [vmem:[#allocation2 + $0x8] sm:$0xff] %v1560
        %1579 = vst [vmem:[#allocation2 + $0x10] sm:$0xff] %v1561
        %1580 = vst [vmem:[#allocation2 + $0x18] sm:$0xff] %v1562
        %1581 = vst [vmem:[#allocation2 + $0x20] sm:$0xff] %v1563
        %1582 = vst [vmem:[#allocation2 + $0x28] sm:$0xff] %v1564
        %1583 = vst [vmem:[#allocation2 + $0x30] sm:$0xff] %v1565
        %1584 = vst [vmem:[#allocation2 + $0x38] sm:$0xff] %v1566
        %1585 = vst [vmem:[#allocation2 + $0x40] sm:$0xff] %v1567
        %1586 = vst [vmem:[#allocation2 + $0x48] sm:$0xff] %v1568
        %1587 = vst [vmem:[#allocation2 + $0x50] sm:$0xff] %v1569
        %1588 = vst [vmem:[#allocation2 + $0x58] sm:$0xff] %v1570
        %1589 = vst [vmem:[#allocation2 + $0x60] sm:$0xff] %v1571
        %1590 = vst [vmem:[#allocation2 + $0x68] sm:$0xff] %v1572
        %1591 = vst [vmem:[#allocation2 + $0x70] sm:$0xff] %v1573
        %1592 = vst [vmem:[#allocation2 + $0x78] sm:$0xff] %v1574
        %1593 = vst [vmem:[#allocation2 + $0x80] sm:$0xff] %v1575
        %1594 = vst [vmem:[#allocation2 + $0x88] sm:$0xff] %v1576
        %s1595 = sadd.s32 %s224, 37
        %s1596 = scalar_lea.vmem %s215, %s1595
        %v1597 = vld [vmem:[%s1596] sm:$0xff]
        %v1598 = vld [vmem:[%s1596 + $0x8] sm:$0xff]
        %v1599 = vld [vmem:[%s1596 + $0x10] sm:$0xff]
        %v1600 = vld [vmem:[%s1596 + $0x18] sm:$0xff]
        %v1601 = vld [vmem:[%s1596 + $0x20] sm:$0xff]
        %v1602 = vld [vmem:[%s1596 + $0x28] sm:$0xff]
        %v1603 = vld [vmem:[%s1596 + $0x30] sm:$0xff]
        %v1604 = vld [vmem:[%s1596 + $0x38] sm:$0xff]
        %v1605 = vld [vmem:[%s1596 + $0x40] sm:$0xff]
        %v1606 = vld [vmem:[%s1596 + $0x48] sm:$0xff]
        %v1607 = vld [vmem:[%s1596 + $0x50] sm:$0xff]
        %v1608 = vld [vmem:[%s1596 + $0x58] sm:$0xff]
        %v1609 = vld [vmem:[%s1596 + $0x60] sm:$0xff]
        %v1610 = vld [vmem:[%s1596 + $0x68] sm:$0xff]
        %v1611 = vld [vmem:[%s1596 + $0x70] sm:$0xff]
        %v1612 = vld [vmem:[%s1596 + $0x78] sm:$0xff]
        %v1613 = vld [vmem:[%s1596 + $0x80] sm:$0xff]
        %v1614 = vld [vmem:[%s1596 + $0x88] sm:$0xff]
        %s1615 = scalar_lea.vmem %s219, 56
        %v1616 = vld [vmem:[%s1615] sm:$0xff]
        %v1618 = vsel %vm245, %v1597, 0
        %v1621 = vsel %vm245, %v1598, 0
        %v1624 = vsel %vm245, %v1599, 0
        %v1627 = vsel %vm245, %v1600, 0
        %v1630 = vsel %vm245, %v1601, 0
        %v1633 = vsel %vm245, %v1602, 0
        %v1636 = vsel %vm245, %v1603, 0
        %v1639 = vsel %vm245, %v1604, 0
        %v1642 = vsel %vm245, %v1605, 0
        %v1645 = vsel %vm245, %v1606, 0
        %v1648 = vsel %vm245, %v1607, 0
        %v1651 = vsel %vm245, %v1608, 0
        %v1654 = vsel %vm245, %v1609, 0
        %v1657 = vsel %vm245, %v1610, 0
        %v1660 = vsel %vm245, %v1611, 0
        %v1663 = vsel %vm245, %v1612, 0
        %v1666 = vsel %vm245, %v1613, 0
        %v1669 = vsel %vm245, %v1614, 0
        %1671 = vmatpush.msra.mxu0 0.0
        %1672 = vmatpush.msra.mxu0 0.0
        %1673 = vmatpush.msra.mxu0 0.0
        %1674 = vmatpush.msra.mxu0 0.0
        %1675 = vmatpush.msra.mxu0 0.0
        %1676 = vmatpush.msra.mxu0 0.0
        %1677 = vmatpush.msra.mxu0 0.0
        %1678 = vmatpush.msra.mxu0 0.0
        %1679 = vmatpush.msra.mxu0 0.0
        %1680 = vmatpush.msra.mxu0 0.0
        %1681 = vmatpush.msra.mxu0 0.0
        %1682 = vmatpush.msra.mxu0 0.0
        %1683 = vmatpush.msra.mxu0 0.0
        %1684 = vmatpush.msra.mxu0 0.0
        %1685 = vmatpush.msra.mxu0 0.0
        %1686 = vmatpush.msra.mxu0 %v1616
        %1687 = vmatmul.f32.gmra.mxu0 %v1618
        %v1688 = vpop.f32.mrf.mxu0
        %v1689 = vadd.f32 0.0, %v1688
        %1690 = vmatmul.f32.gmra.mxu0 %v1621
        %v1691 = vpop.f32.mrf.mxu0
        %v1692 = vadd.f32 0.0, %v1691
        %1693 = vmatmul.f32.gmra.mxu0 %v1624
        %v1694 = vpop.f32.mrf.mxu0
        %v1695 = vadd.f32 0.0, %v1694
        %1696 = vmatmul.f32.gmra.mxu0 %v1627
        %v1697 = vpop.f32.mrf.mxu0
        %v1698 = vadd.f32 0.0, %v1697
        %1699 = vmatmul.f32.gmra.mxu0 %v1630
        %v1700 = vpop.f32.mrf.mxu0
        %v1701 = vadd.f32 0.0, %v1700
        %1702 = vmatmul.f32.gmra.mxu0 %v1633
        %v1703 = vpop.f32.mrf.mxu0
        %v1704 = vadd.f32 0.0, %v1703
        %1705 = vmatmul.f32.gmra.mxu0 %v1636
        %v1706 = vpop.f32.mrf.mxu0
        %v1707 = vadd.f32 0.0, %v1706
        %1708 = vmatmul.f32.gmra.mxu0 %v1639
        %v1709 = vpop.f32.mrf.mxu0
        %v1710 = vadd.f32 0.0, %v1709
        %1711 = vmatmul.f32.gmra.mxu0 %v1642
        %v1712 = vpop.f32.mrf.mxu0
        %v1713 = vadd.f32 0.0, %v1712
        %1714 = vmatmul.f32.gmra.mxu0 %v1645
        %v1715 = vpop.f32.mrf.mxu0
        %v1716 = vadd.f32 0.0, %v1715
        %1717 = vmatmul.f32.gmra.mxu0 %v1648
        %v1718 = vpop.f32.mrf.mxu0
        %v1719 = vadd.f32 0.0, %v1718
        %1720 = vmatmul.f32.gmra.mxu0 %v1651
        %v1721 = vpop.f32.mrf.mxu0
        %v1722 = vadd.f32 0.0, %v1721
        %1723 = vmatmul.f32.gmra.mxu0 %v1654
        %v1724 = vpop.f32.mrf.mxu0
        %v1725 = vadd.f32 0.0, %v1724
        %1726 = vmatmul.f32.gmra.mxu0 %v1657
        %v1727 = vpop.f32.mrf.mxu0
        %v1728 = vadd.f32 0.0, %v1727
        %1729 = vmatmul.f32.gmra.mxu0 %v1660
        %v1730 = vpop.f32.mrf.mxu0
        %v1731 = vadd.f32 0.0, %v1730
        %1732 = vmatmul.f32.gmra.mxu0 %v1663
        %v1733 = vpop.f32.mrf.mxu0
        %v1734 = vadd.f32 0.0, %v1733
        %1735 = vmatmul.f32.gmra.mxu0 %v1666
        %v1736 = vpop.f32.mrf.mxu0
        %v1737 = vadd.f32 0.0, %v1736
        %1738 = vmatmul.f32.gmra.mxu0 %v1669
        %v1739 = vpop.f32.mrf.mxu0
        %v1740 = vadd.f32 0.0, %v1739
        %1741 = vdwg.mxu0
        %v1742 = vld [vmem:[#allocation2] sm:$0xff]
        %v1743 = vld [vmem:[#allocation2 + $0x8] sm:$0xff]
        %v1744 = vld [vmem:[#allocation2 + $0x10] sm:$0xff]
        %v1745 = vld [vmem:[#allocation2 + $0x18] sm:$0xff]
        %v1746 = vld [vmem:[#allocation2 + $0x20] sm:$0xff]
        %v1747 = vld [vmem:[#allocation2 + $0x28] sm:$0xff]
        %v1748 = vld [vmem:[#allocation2 + $0x30] sm:$0xff]
        %v1749 = vld [vmem:[#allocation2 + $0x38] sm:$0xff]
        %v1750 = vld [vmem:[#allocation2 + $0x40] sm:$0xff]
        %v1751 = vld [vmem:[#allocation2 + $0x48] sm:$0xff]
        %v1752 = vld [vmem:[#allocation2 + $0x50] sm:$0xff]
        %v1753 = vld [vmem:[#allocation2 + $0x58] sm:$0xff]
        %v1754 = vld [vmem:[#allocation2 + $0x60] sm:$0xff]
        %v1755 = vld [vmem:[#allocation2 + $0x68] sm:$0xff]
        %v1756 = vld [vmem:[#allocation2 + $0x70] sm:$0xff]
        %v1757 = vld [vmem:[#allocation2 + $0x78] sm:$0xff]
        %v1758 = vld [vmem:[#allocation2 + $0x80] sm:$0xff]
        %v1759 = vld [vmem:[#allocation2 + $0x88] sm:$0xff]
        %v1760 = vadd.f32 %v1742, %v1689
        %v1761 = vadd.f32 %v1743, %v1692
        %v1762 = vadd.f32 %v1744, %v1695
        %v1763 = vadd.f32 %v1745, %v1698
        %v1764 = vadd.f32 %v1746, %v1701
        %v1765 = vadd.f32 %v1747, %v1704
        %v1766 = vadd.f32 %v1748, %v1707
        %v1767 = vadd.f32 %v1749, %v1710
        %v1768 = vadd.f32 %v1750, %v1713
        %v1769 = vadd.f32 %v1751, %v1716
        %v1770 = vadd.f32 %v1752, %v1719
        %v1771 = vadd.f32 %v1753, %v1722
        %v1772 = vadd.f32 %v1754, %v1725
        %v1773 = vadd.f32 %v1755, %v1728
        %v1774 = vadd.f32 %v1756, %v1731
        %v1775 = vadd.f32 %v1757, %v1734
        %v1776 = vadd.f32 %v1758, %v1737
        %v1777 = vadd.f32 %v1759, %v1740
        %1778 = vst [vmem:[#allocation2] sm:$0xff] %v1760
        %1779 = vst [vmem:[#allocation2 + $0x8] sm:$0xff] %v1761
        %1780 = vst [vmem:[#allocation2 + $0x10] sm:$0xff] %v1762
        %1781 = vst [vmem:[#allocation2 + $0x18] sm:$0xff] %v1763
        %1782 = vst [vmem:[#allocation2 + $0x20] sm:$0xff] %v1764
        %1783 = vst [vmem:[#allocation2 + $0x28] sm:$0xff] %v1765
        %1784 = vst [vmem:[#allocation2 + $0x30] sm:$0xff] %v1766
        %1785 = vst [vmem:[#allocation2 + $0x38] sm:$0xff] %v1767
        %1786 = vst [vmem:[#allocation2 + $0x40] sm:$0xff] %v1768
        %1787 = vst [vmem:[#allocation2 + $0x48] sm:$0xff] %v1769
        %1788 = vst [vmem:[#allocation2 + $0x50] sm:$0xff] %v1770
        %1789 = vst [vmem:[#allocation2 + $0x58] sm:$0xff] %v1771
        %1790 = vst [vmem:[#allocation2 + $0x60] sm:$0xff] %v1772
        %1791 = vst [vmem:[#allocation2 + $0x68] sm:$0xff] %v1773
        %1792 = vst [vmem:[#allocation2 + $0x70] sm:$0xff] %v1774
        %1793 = vst [vmem:[#allocation2 + $0x78] sm:$0xff] %v1775
        %1794 = vst [vmem:[#allocation2 + $0x80] sm:$0xff] %v1776
        %1795 = vst [vmem:[#allocation2 + $0x88] sm:$0xff] %v1777
        %s1796 = sadd.s32 %s224, 38
        %s1797 = scalar_lea.vmem %s215, %s1796
        %v1798 = vld [vmem:[%s1797] sm:$0xff]
        %v1799 = vld [vmem:[%s1797 + $0x8] sm:$0xff]
        %v1800 = vld [vmem:[%s1797 + $0x10] sm:$0xff]
        %v1801 = vld [vmem:[%s1797 + $0x18] sm:$0xff]
        %v1802 = vld [vmem:[%s1797 + $0x20] sm:$0xff]
        %v1803 = vld [vmem:[%s1797 + $0x28] sm:$0xff]
        %v1804 = vld [vmem:[%s1797 + $0x30] sm:$0xff]
        %v1805 = vld [vmem:[%s1797 + $0x38] sm:$0xff]
        %v1806 = vld [vmem:[%s1797 + $0x40] sm:$0xff]
        %v1807 = vld [vmem:[%s1797 + $0x48] sm:$0xff]
        %v1808 = vld [vmem:[%s1797 + $0x50] sm:$0xff]
        %v1809 = vld [vmem:[%s1797 + $0x58] sm:$0xff]
        %v1810 = vld [vmem:[%s1797 + $0x60] sm:$0xff]
        %v1811 = vld [vmem:[%s1797 + $0x68] sm:$0xff]
        %v1812 = vld [vmem:[%s1797 + $0x70] sm:$0xff]
        %v1813 = vld [vmem:[%s1797 + $0x78] sm:$0xff]
        %v1814 = vld [vmem:[%s1797 + $0x80] sm:$0xff]
        %v1815 = vld [vmem:[%s1797 + $0x88] sm:$0xff]
        %s1816 = scalar_lea.vmem %s219, 64
        %v1817 = vld [vmem:[%s1816] sm:$0xff]
        %v1819 = vsel %vm245, %v1798, 0
        %v1822 = vsel %vm245, %v1799, 0
        %v1825 = vsel %vm245, %v1800, 0
        %v1828 = vsel %vm245, %v1801, 0
        %v1831 = vsel %vm245, %v1802, 0
        %v1834 = vsel %vm245, %v1803, 0
        %v1837 = vsel %vm245, %v1804, 0
        %v1840 = vsel %vm245, %v1805, 0
        %v1843 = vsel %vm245, %v1806, 0
        %v1846 = vsel %vm245, %v1807, 0
        %v1849 = vsel %vm245, %v1808, 0
        %v1852 = vsel %vm245, %v1809, 0
        %v1855 = vsel %vm245, %v1810, 0
        %v1858 = vsel %vm245, %v1811, 0
        %v1861 = vsel %vm245, %v1812, 0
        %v1864 = vsel %vm245, %v1813, 0
        %v1867 = vsel %vm245, %v1814, 0
        %v1870 = vsel %vm245, %v1815, 0
        %1872 = vmatpush.msra.mxu0 0.0
        %1873 = vmatpush.msra.mxu0 0.0
        %1874 = vmatpush.msra.mxu0 0.0
        %1875 = vmatpush.msra.mxu0 0.0
        %1876 = vmatpush.msra.mxu0 0.0
        %1877 = vmatpush.msra.mxu0 0.0
        %1878 = vmatpush.msra.mxu0 0.0
        %1879 = vmatpush.msra.mxu0 0.0
        %1880 = vmatpush.msra.mxu0 0.0
        %1881 = vmatpush.msra.mxu0 0.0
        %1882 = vmatpush.msra.mxu0 0.0
        %1883 = vmatpush.msra.mxu0 0.0
        %1884 = vmatpush.msra.mxu0 0.0
        %1885 = vmatpush.msra.mxu0 0.0
        %1886 = vmatpush.msra.mxu0 0.0
        %1887 = vmatpush.msra.mxu0 %v1817
        %1888 = vmatmul.f32.gmra.mxu0 %v1819
        %v1889 = vpop.f32.mrf.mxu0
        %v1890 = vadd.f32 0.0, %v1889
        %1891 = vmatmul.f32.gmra.mxu0 %v1822
        %v1892 = vpop.f32.mrf.mxu0
        %v1893 = vadd.f32 0.0, %v1892
        %1894 = vmatmul.f32.gmra.mxu0 %v1825
        %v1895 = vpop.f32.mrf.mxu0
        %v1896 = vadd.f32 0.0, %v1895
        %1897 = vmatmul.f32.gmra.mxu0 %v1828
        %v1898 = vpop.f32.mrf.mxu0
        %v1899 = vadd.f32 0.0, %v1898
        %1900 = vmatmul.f32.gmra.mxu0 %v1831
        %v1901 = vpop.f32.mrf.mxu0
        %v1902 = vadd.f32 0.0, %v1901
        %1903 = vmatmul.f32.gmra.mxu0 %v1834
        %v1904 = vpop.f32.mrf.mxu0
        %v1905 = vadd.f32 0.0, %v1904
        %1906 = vmatmul.f32.gmra.mxu0 %v1837
        %v1907 = vpop.f32.mrf.mxu0
        %v1908 = vadd.f32 0.0, %v1907
        %1909 = vmatmul.f32.gmra.mxu0 %v1840
        %v1910 = vpop.f32.mrf.mxu0
        %v1911 = vadd.f32 0.0, %v1910
        %1912 = vmatmul.f32.gmra.mxu0 %v1843
        %v1913 = vpop.f32.mrf.mxu0
        %v1914 = vadd.f32 0.0, %v1913
        %1915 = vmatmul.f32.gmra.mxu0 %v1846
        %v1916 = vpop.f32.mrf.mxu0
        %v1917 = vadd.f32 0.0, %v1916
        %1918 = vmatmul.f32.gmra.mxu0 %v1849
        %v1919 = vpop.f32.mrf.mxu0
        %v1920 = vadd.f32 0.0, %v1919
        %1921 = vmatmul.f32.gmra.mxu0 %v1852
        %v1922 = vpop.f32.mrf.mxu0
        %v1923 = vadd.f32 0.0, %v1922
        %1924 = vmatmul.f32.gmra.mxu0 %v1855
        %v1925 = vpop.f32.mrf.mxu0
        %v1926 = vadd.f32 0.0, %v1925
        %1927 = vmatmul.f32.gmra.mxu0 %v1858
        %v1928 = vpop.f32.mrf.mxu0
        %v1929 = vadd.f32 0.0, %v1928
        %1930 = vmatmul.f32.gmra.mxu0 %v1861
        %v1931 = vpop.f32.mrf.mxu0
        %v1932 = vadd.f32 0.0, %v1931
        %1933 = vmatmul.f32.gmra.mxu0 %v1864
        %v1934 = vpop.f32.mrf.mxu0
        %v1935 = vadd.f32 0.0, %v1934
        %1936 = vmatmul.f32.gmra.mxu0 %v1867
        %v1937 = vpop.f32.mrf.mxu0
        %v1938 = vadd.f32 0.0, %v1937
        %1939 = vmatmul.f32.gmra.mxu0 %v1870
        %v1940 = vpop.f32.mrf.mxu0
        %v1941 = vadd.f32 0.0, %v1940
        %1942 = vdwg.mxu0
        %v1943 = vld [vmem:[#allocation2] sm:$0xff]
        %v1944 = vld [vmem:[#allocation2 + $0x8] sm:$0xff]
        %v1945 = vld [vmem:[#allocation2 + $0x10] sm:$0xff]
        %v1946 = vld [vmem:[#allocation2 + $0x18] sm:$0xff]
        %v1947 = vld [vmem:[#allocation2 + $0x20] sm:$0xff]
        %v1948 = vld [vmem:[#allocation2 + $0x28] sm:$0xff]
        %v1949 = vld [vmem:[#allocation2 + $0x30] sm:$0xff]
        %v1950 = vld [vmem:[#allocation2 + $0x38] sm:$0xff]
        %v1951 = vld [vmem:[#allocation2 + $0x40] sm:$0xff]
        %v1952 = vld [vmem:[#allocation2 + $0x48] sm:$0xff]
        %v1953 = vld [vmem:[#allocation2 + $0x50] sm:$0xff]
        %v1954 = vld [vmem:[#allocation2 + $0x58] sm:$0xff]
        %v1955 = vld [vmem:[#allocation2 + $0x60] sm:$0xff]
        %v1956 = vld [vmem:[#allocation2 + $0x68] sm:$0xff]
        %v1957 = vld [vmem:[#allocation2 + $0x70] sm:$0xff]
        %v1958 = vld [vmem:[#allocation2 + $0x78] sm:$0xff]
        %v1959 = vld [vmem:[#allocation2 + $0x80] sm:$0xff]
        %v1960 = vld [vmem:[#allocation2 + $0x88] sm:$0xff]
        %v1961 = vadd.f32 %v1943, %v1890
        %v1962 = vadd.f32 %v1944, %v1893
        %v1963 = vadd.f32 %v1945, %v1896
        %v1964 = vadd.f32 %v1946, %v1899
        %v1965 = vadd.f32 %v1947, %v1902
        %v1966 = vadd.f32 %v1948, %v1905
        %v1967 = vadd.f32 %v1949, %v1908
        %v1968 = vadd.f32 %v1950, %v1911
        %v1969 = vadd.f32 %v1951, %v1914
        %v1970 = vadd.f32 %v1952, %v1917
        %v1971 = vadd.f32 %v1953, %v1920
        %v1972 = vadd.f32 %v1954, %v1923
        %v1973 = vadd.f32 %v1955, %v1926
        %v1974 = vadd.f32 %v1956, %v1929
        %v1975 = vadd.f32 %v1957, %v1932
        %v1976 = vadd.f32 %v1958, %v1935
        %v1977 = vadd.f32 %v1959, %v1938
        %v1978 = vadd.f32 %v1960, %v1941
        %1979 = vst [vmem:[#allocation2] sm:$0xff] %v1961
        %1980 = vst [vmem:[#allocation2 + $0x8] sm:$0xff] %v1962
        %1981 = vst [vmem:[#allocation2 + $0x10] sm:$0xff] %v1963
        %1982 = vst [vmem:[#allocation2 + $0x18] sm:$0xff] %v1964
        %1983 = vst [vmem:[#allocation2 + $0x20] sm:$0xff] %v1965
        %1984 = vst [vmem:[#allocation2 + $0x28] sm:$0xff] %v1966
        %1985 = vst [vmem:[#allocation2 + $0x30] sm:$0xff] %v1967
        %1986 = vst [vmem:[#allocation2 + $0x38] sm:$0xff] %v1968
        %1987 = vst [vmem:[#allocation2 + $0x40] sm:$0xff] %v1969
        %1988 = vst [vmem:[#allocation2 + $0x48] sm:$0xff] %v1970
        %1989 = vst [vmem:[#allocation2 + $0x50] sm:$0xff] %v1971
        %1990 = vst [vmem:[#allocation2 + $0x58] sm:$0xff] %v1972
        %1991 = vst [vmem:[#allocation2 + $0x60] sm:$0xff] %v1973
        %1992 = vst [vmem:[#allocation2 + $0x68] sm:$0xff] %v1974
        %1993 = vst [vmem:[#allocation2 + $0x70] sm:$0xff] %v1975
        %1994 = vst [vmem:[#allocation2 + $0x78] sm:$0xff] %v1976
        %1995 = vst [vmem:[#allocation2 + $0x80] sm:$0xff] %v1977
        %1996 = vst [vmem:[#allocation2 + $0x88] sm:$0xff] %v1978
        %v1997 = vld [vmem:[#allocation2] sm:$0xff]
        %v1998 = vld [vmem:[#allocation2 + $0x8] sm:$0xff]
        %v1999 = vld [vmem:[#allocation2 + $0x10] sm:$0xff]
        %v2000 = vld [vmem:[#allocation2 + $0x18] sm:$0xff]
        %v2001 = vld [vmem:[#allocation2 + $0x20] sm:$0xff]
        %v2002 = vld [vmem:[#allocation2 + $0x28] sm:$0xff]
        %v2003 = vld [vmem:[#allocation2 + $0x30] sm:$0xff]
        %v2004 = vld [vmem:[#allocation2 + $0x38] sm:$0xff]
        %v2005 = vld [vmem:[#allocation2 + $0x40] sm:$0xff]
        %v2006 = vld [vmem:[#allocation2 + $0x48] sm:$0xff]
        %v2007 = vld [vmem:[#allocation2 + $0x50] sm:$0xff]
        %v2008 = vld [vmem:[#allocation2 + $0x58] sm:$0xff]
        %v2009 = vld [vmem:[#allocation2 + $0x60] sm:$0xff]
        %v2010 = vld [vmem:[#allocation2 + $0x68] sm:$0xff]
        %v2011 = vld [vmem:[#allocation2 + $0x70] sm:$0xff]
        %v2012 = vld [vmem:[#allocation2 + $0x78] sm:$0xff]
        %v2013 = vld [vmem:[#allocation2 + $0x80] sm:$0xff]
        %v2014 = vld [vmem:[#allocation2 + $0x88] sm:$0xff]
        %v2015 = vld [vmem:[%s222] sm:$0x1]
        %v2017 = vperm.slane %v2015, 0
        %v2019 = vadd.f32 %v1997, %v2017
        %v2020 = vadd.f32 %v1998, %v2017
        %v2021 = vadd.f32 %v1999, %v2017
        %v2022 = vadd.f32 %v2000, %v2017
        %v2023 = vadd.f32 %v2001, %v2017
        %v2024 = vadd.f32 %v2002, %v2017
        %v2025 = vadd.f32 %v2003, %v2017
        %v2026 = vadd.f32 %v2004, %v2017
        %v2027 = vadd.f32 %v2005, %v2017
        %v2028 = vadd.f32 %v2006, %v2017
        %v2029 = vadd.f32 %v2007, %v2017
        %v2030 = vadd.f32 %v2008, %v2017
        %v2031 = vadd.f32 %v2009, %v2017
        %v2032 = vadd.f32 %v2010, %v2017
        %v2033 = vadd.f32 %v2011, %v2017
        %v2034 = vadd.f32 %v2012, %v2017
        %v2035 = vadd.f32 %v2013, %v2017
        %v2036 = vadd.f32 %v2014, %v2017
        %2037 = vst [vmem:[%s210] sm:$0xff] %v2019
        %2038 = vst [vmem:[%s210 + $0x8] sm:$0xff] %v2020
        %2039 = vst [vmem:[%s210 + $0x10] sm:$0xff] %v2021
        %2040 = vst [vmem:[%s210 + $0x18] sm:$0xff] %v2022
        %2041 = vst [vmem:[%s210 + $0x20] sm:$0xff] %v2023
        %2042 = vst [vmem:[%s210 + $0x28] sm:$0xff] %v2024
        %2043 = vst [vmem:[%s210 + $0x30] sm:$0xff] %v2025
        %2044 = vst [vmem:[%s210 + $0x38] sm:$0xff] %v2026
        %2045 = vst [vmem:[%s210 + $0x40] sm:$0xff] %v2027
        %2046 = vst [vmem:[%s210 + $0x48] sm:$0xff] %v2028
        %2047 = vst [vmem:[%s210 + $0x50] sm:$0xff] %v2029
        %2048 = vst [vmem:[%s210 + $0x58] sm:$0xff] %v2030
        %2049 = vst [vmem:[%s210 + $0x60] sm:$0xff] %v2031
        %2050 = vst [vmem:[%s210 + $0x68] sm:$0xff] %v2032
        %2051 = vst [vmem:[%s210 + $0x70] sm:$0xff] %v2033
        %2052 = vst [vmem:[%s210 + $0x78] sm:$0xff] %v2034
        %2053 = vst [vmem:[%s210 + $0x80] sm:$0xff] %v2035
        %2054 = vst [vmem:[%s210 + $0x88] sm:$0xff] %v2036
        %s2055 = sand.u32 %s126, 1
        %s2056 = scalar_lea.sflag [#allocation4], %s2055
        %s2057 = sand.u32 %s126, 1
        %s2058 = smul.addr %s2057, 144
        %s2059 = scalar_lea.vmem [#allocation3], %s2058
        // Predicated region
        $region33: #{tpu_custom_call.1} parent=31 // pred_check
          %p2060 = pneg %p136
        $region34: #{tpu_custom_call.1} parent=31 // pred_check_branch
          %2062 = sbr.rel (%p2060) target = $region36
        $region35: #{tpu_custom_call.1} parent=31 // pred_region
          %s2063 = smul.u32 18, %s24
          %2065 = vsyncadd %s2056, 0
          %s2066 = sadd.s32 %s23, %s2063
          %s2067 = smul.addr %s22, 36
          %s2068 = sadd.s32 %s2066, %s2067
          %s2069 = smul.addr %s2068, 8
          %s2070 = scalar_lea.hbm %s3, %s2069
          %s2071 = sshll.u32 %s2059, 4
          %s2072 = int_to_ptr.vmem [resolvable:$true] %s2071
          %s2073 = sshll.u32 %s2070, 4
          %s2074 = int_to_ptr.hbm [resolvable:$true] %s2073
          %2079 = dma.vmem_to_hbm [thread:$0]  %s2072, 2304, %s2074, %s2056, 128, 128, 8
        $region36: #{tpu_custom_call.1} parent=31 // pred_fallthru
          _
      $region32: #{tpu_custom_call.1} parent=5 // pred_fallthru
        _
      %p2080 = scmp.le.s32.totalorder 2, %s12
      // Predicated region
      $region37: #{tpu_custom_call.1} parent=5 // pred_check
        %p2081 = pneg %p2080
      $region38: #{tpu_custom_call.1} parent=5 // pred_check_branch
        %2083 = sbr.rel (%p2081) target = $region40
      $region39: #{tpu_custom_call.1} parent=5 // pred_region
        %s2084 = ssub.s32 %s12, 2
        // Predicated region
        $region41: #{tpu_custom_call.1} parent=39 // pred_check
          %p2085 = pneg %p142
        $region42: #{tpu_custom_call.1} parent=39 // pred_check_branch
          %2087 = sbr.rel (%p2085) target = $region44
        $region43: #{tpu_custom_call.1} parent=39 // pred_region
          %s2088 = sand.u32 %s127, 1
          %s2089 = scalar_lea.sflag [#allocation4], %s2088
          %s2090 = sand.u32 %s127, 1
          %s2091 = smul.addr %s2090, 144
          %s2092 = scalar_lea.vmem [#allocation3], %s2091
          %2094 = dma.done %s2089, 2304
        $region44: #{tpu_custom_call.1} parent=39 // pred_fallthru
          _
      $region40: #{tpu_custom_call.1} parent=5 // pred_fallthru
        _
    $region6: #{tpu_custom_call.1} parent=1 // loop_footer
      %s16 = sadd.s32 1, %s12
    $region7: #{tpu_custom_call.1} parent=1 // loop_footer_branch
      %11 = sbr.rel target = $region3
    $region8: #{tpu_custom_call.1} parent=1 // loop_exit
      _
    %2095 = vsyncpa [#allocation4], 1
    %s2096 = scalar_lea.sflag [#allocation4], 1
    %2097 = vsyncpa %s2096, 1

</llo_original>
